<compile_context>
chip_gen: v7x
topology: tpu7x:2x2x1
jax: 0.10.0
libtpu: 0.0.40
codegen_flags: <defaults>
</compile_context>

<pallas_src>
import functools

import jax
import jax.numpy as jnp
from jax import lax
from jax.experimental import pallas as pl
from jax.experimental.pallas import tpu as pltpu

# dot_general dimension numbers for "contract the last dim of both operands",
# i.e. A @ B.T without materializing a transpose (MXU-friendly NT matmul).
_NT = (((1,), (1,)), ((), ()))
# Head-batched NT: contract last dims, batch over the leading (head) dim.
_BATCHED_NT = (((2,), (2,)), ((0,), (0,)))


def _cross_att_kernel(q_ref, k_ref, wq_ref, wkv_ref, wo_ref, o_ref, *,
                      num_heads, feature_dtype):
    bt, lq, dq = q_ref.shape          # (Bt, Lq, Dq)
    _, lk, dk = k_ref.shape           # (Bt, Lk, Dk)
    h_total = wq_ref.shape[0]         # num_hiddens
    dh = h_total // num_heads

    wq = wq_ref[...]                  # (H, Dq)
    wkv = wkv_ref[...]                # (2H, Dk)  = [W_k; W_v] stacked
    wo = wo_ref[...]                  # (H, H)

    # ---- Batched projections: two NT matmuls for the whole block. -----------
    # Both produce TRANSPOSED results (features on sublanes, rows on lanes) so
    # per-batch / per-head slicing is cheap and scoring keeps Lk on lanes.
    q2 = q_ref[...].reshape(bt * lq, dq)                                # (Bt*Lq, Dq)
    k2 = k_ref[...].reshape(bt * lk, dk)                                # (Bt*Lk, Dk)
    qT = lax.dot_general(wq, q2, _NT,
                         preferred_element_type=jnp.float32)            # (H, Bt*Lq)
    kvT = lax.dot_general(wkv, k2, _NT,
                          preferred_element_type=jnp.float32)           # (2H, Bt*Lk)
    kT = kvT[:h_total, :]                                               # (H, Bt*Lk)
    vT = kvT[h_total:, :]                                               # (H, Bt*Lk)

    # bf16 feature path: cast scoring operands ONCE (no per-iter casts).
    qT_f = qT.astype(feature_dtype)
    kT_f = kT.astype(feature_dtype)

    cat_rows = []
    for b in range(bt):               # Bt is tiny (1-2 at these shapes)
        qT_b = qT_f[:, b * lq:(b + 1) * lq]        # (H, Lq)
        kT_b = kT_f[:, b * lk:(b + 1) * lk]        # (H, Lk)
        vT_b = vT[:, b * lk:(b + 1) * lk]          # (H, Lk)

        # Additive features for ALL heads/features: one broadcast pair + ONE
        # tanh (EUP) over (H, Lq, Lk) instead of dh*heads tiny pushes.
        feat = qT_b[:, :, None] + kT_b[:, None, :]                      # (H, Lq, Lk)
        t = jnp.tanh(feat)                                              # feature_dtype

        # Per-head reduction over dh (slab-axis VPU adds); upcast only the
        # reduced scores on the bf16 path.
        scores = jnp.stack(
            [jnp.sum(t[h * dh:(h + 1) * dh], axis=0, dtype=jnp.float32)
             for h in range(num_heads)], axis=0)                        # (nh, Lq, Lk)

        # Numerically-stable softmax; normalize AFTER the PV matmul so the
        # divide becomes one EUP reciprocal per (head, query row).
        m = jnp.max(scores, axis=-1, keepdims=True)                     # (nh, Lq, 1)
        e = jnp.exp(scores - m)                                         # (nh, Lq, Lk)
        l = jnp.sum(e, axis=-1, keepdims=True)                          # (nh, Lq, 1)

        v_r = vT_b.reshape(num_heads, dh, lk)                           # (nh, dh, Lk)
        pv = lax.dot_general(e, v_r, _BATCHED_NT,
                             preferred_element_type=jnp.float32)        # (nh, Lq, dh)
        heads = pv * pl.reciprocal(l, approx=True)                      # (nh, Lq, dh)

        # Head concat stays in vregs (no VMEM scratch round-trip / masked
        # 8-lane partial stores).
        cat_rows.append(
            jnp.concatenate([heads[h] for h in range(num_heads)], axis=-1))  # (Lq, H)

    concat = cat_rows[0] if bt == 1 else jnp.concatenate(cat_rows, axis=0)   # (Bt*Lq, H)

    # Single fused output projection over all heads/batches + one-shot store.
    out = lax.dot_general(concat, wo, _NT,
                          preferred_element_type=jnp.float32)           # (Bt*Lq, H)
    o_ref[...] = out.reshape(bt, lq, h_total).astype(o_ref.dtype)
    # TODO(synk): for much larger Lq*H, present a lane-dense (B, Lq*H) output
    # in the wrapper so the final store is an unmasked full-lane vst.


def cross_att_pallas(queries, keys, values, wq, wk, wv, wo, num_heads, *,
                     batch_block=None, feature_dtype=jnp.float32):
    """Repaired CrossAtt forward.

    NOTE: `values` is intentionally ignored — the PyTorch source computes
    values = W_v(keys).  feature_dtype=jnp.bfloat16 is recommended on v6e/v7x
    (bf16 EUP tanh, half the EUP pushes); keep float32 on v5e.
    softmax normalization uses pl.reciprocal(approx=True) (~1e-3 rel error).
    """
    del values  # the source forward uses W_v(keys) as the values
    B, Lq, Dq = queries.shape
    Bk, Lk, Dk = keys.shape
    H = wq.shape[0]
    assert Bk == B
    assert wq.shape == (H, Dq)
    assert wk.shape == (H, Dk)
    # Source computes values = W_v(keys), so W_v's in-features must equal Dk.
    assert wv.shape == (H, Dk), "W_v is applied to `keys` in the source forward"
    assert wo.shape == (H, H)
    assert H % num_heads == 0, "num_hiddens must be divisible by num_heads"

    # Stack W_k / W_v so K and V come from one NT matmul in the kernel.
    wkv = jnp.concatenate([wk, wv], axis=0)                              # (2H, Dk)

    if batch_block is None:
        # Pack rows toward a 64-sublane target, but keep the grid at >= 2
        # parallel steps whenever B >= 2 so both v7x TensorCores get work
        # (no-op on single-TC v5e/v6e).  Must divide B.
        row_target = max(1, -(-64 // Lq))
        bt_cap = min(B, row_target)
        if B >= 2:
            bt_cap = max(1, min(bt_cap, B // 2))
        batch_block = next(bt for bt in range(bt_cap, 0, -1) if B % bt == 0)
    assert B % batch_block == 0
    Bt = batch_block

    kernel = functools.partial(_cross_att_kernel, num_heads=num_heads,
                               feature_dtype=feature_dtype)

    # Advisory cost estimate for XLA scheduling around the call.
    flops = B * (2 * Lq * Dq * H            # Q projection
                 + 2 * Lk * Dk * 2 * H      # fused K/V projection
                 + 2 * Lq * Lk * H          # additive features + per-head reduce
                 + 2 * Lq * Lk * H          # head-batched PV matmul
                 + 2 * Lq * H * H)          # fused W_o matmul
    transcendentals = B * (Lq * Lk * H            # tanh
                           + Lq * Lk * num_heads  # exp
                           + Lq * num_heads)      # reciprocal
    act_bytes = queries.dtype.itemsize
    bytes_accessed = (queries.size * act_bytes + keys.size * act_bytes
                      + wq.size * wq.dtype.itemsize
                      + wkv.size * wkv.dtype.itemsize
                      + wo.size * wo.dtype.itemsize
                      + B * Lq * H * act_bytes)

    return pl.pallas_call(
        kernel,
        out_shape=jax.ShapeDtypeStruct((B, Lq, H), queries.dtype),
        grid=(B // Bt,),
        in_specs=[
            pl.BlockSpec((Bt, Lq, Dq), lambda i: (i, 0, 0)),
            pl.BlockSpec((Bt, Lk, Dk), lambda i: (i, 0, 0)),
            pl.BlockSpec((H, Dq), lambda i: (0, 0)),
            pl.BlockSpec((2 * H, Dk), lambda i: (0, 0)),
            pl.BlockSpec((H, H), lambda i: (0, 0)),
        ],
        out_specs=pl.BlockSpec((Bt, Lq, H), lambda i: (i, 0, 0)),
        compiler_params=pltpu.CompilerParams(
            dimension_semantics=("parallel",)),
        cost_estimate=pl.CostEstimate(
            flops=int(flops),
            transcendentals=int(transcendentals),
            bytes_accessed=int(bytes_accessed)),
    )(queries, keys, wq, wkv, wo)


def cross_att_ref(queries, keys, values, wq, wk, wv, wo, num_heads):
    """Pure-JAX reference implementing the same (repaired) semantics."""
    del values
    q = queries @ wq.T                                   # (B, Lq, H)
    k = keys @ wk.T                                      # (B, Lk, H)
    v = keys @ wv.T                                      # (B, Lk, H)
    B, Lq, H = q.shape
    Lk = k.shape[1]
    dh = H // num_heads
    qh = q.reshape(B, Lq, num_heads, dh).transpose(0, 2, 1, 3)   # (B, nh, Lq, dh)
    kh = k.reshape(B, Lk, num_heads, dh).transpose(0, 2, 1, 3)
    vh = v.reshape(B, Lk, num_heads, dh).transpose(0, 2, 1, 3)
    scores = jnp.sum(jnp.tanh(qh[:, :, :, None, :] + kh[:, :, None, :, :]),
                     axis=-1)                                    # (B, nh, Lq, Lk)
    attn = jax.nn.softmax(scores, axis=-1)
    out = jnp.einsum('bhqk,bhkd->bhqd', attn, vh)                # (B, nh, Lq, dh)
    concat = out.transpose(0, 2, 1, 3).reshape(B, Lq, H)
    return concat @ wo.T


if __name__ == "__main__":
    B, Lq, Lk = 2, 8, 8
    query_size = key_size = value_size = 16
    num_hiddens, num_heads = 32, 4

    root = jax.random.PRNGKey(0)
    k1, k2, k3, k4, k5, k6, k7 = jax.random.split(root, 7)

    queries = jax.random.normal(k1, (B, Lq, query_size), jnp.float32)
    keys_in = jax.random.normal(k2, (B, Lk, key_size), jnp.float32)
    values_in = jax.random.normal(k3, (B, Lk, value_size), jnp.float32)

    def init_w(k, out_f, in_f):
        bound = 1.0 / (in_f ** 0.5)
        return jax.random.uniform(k, (out_f, in_f), jnp.float32, -bound, bound)

    wq = init_w(k4, num_hiddens, query_size)
    wk = init_w(k5, num_hiddens, key_size)
    wv = init_w(k6, num_hiddens, value_size)
    wo = init_w(k7, num_hiddens, num_hiddens)

    ref = cross_att_ref(queries, keys_in, values_in, wq, wk, wv, wo, num_heads)

    # float32 feature path (default; v5e-safe) -- tight numerical check.
    out = cross_att_pallas(queries, keys_in, values_in, wq, wk, wv, wo,
                           num_heads, feature_dtype=jnp.float32)
    out = jax.block_until_ready(out)
    assert out.shape == (B, Lq, num_hiddens)
    # Tolerance accounts for the EUP approximate reciprocal in the softmax
    # normalization (pl.reciprocal(..., approx=True)); everything else is f32.
    assert jnp.allclose(out, ref, atol=5e-3, rtol=5e-3)

    # bfloat16 feature path (recommended on v6e/v7x: bf16 EUP tanh, half the
    # pushes).  Loose tolerance: (q+k) is rounded to bf16 before tanh.
    out_bf16 = cross_att_pallas(queries, keys_in, values_in, wq, wk, wv, wo,
                                num_heads, feature_dtype=jnp.bfloat16)
    out_bf16 = jax.block_until_ready(out_bf16)
    assert out_bf16.shape == (B, Lq, num_hiddens)
    assert jnp.all(jnp.isfinite(out_bf16))
    assert jnp.allclose(out_bf16, ref, atol=2.5e-1, rtol=2.5e-1)

    print("KERNEL_OK")
</pallas_src>

<mosaic_0001>
module attributes {stable_mosaic.version = 11 : i64} {
  func.func @_cross_att_kernel(%arg0: i32, %arg1: memref<1x8x16xf32, #tpu.memory_space<vmem>>, %arg2: memref<1x8x16xf32, #tpu.memory_space<vmem>>, %arg3: memref<32x16xf32, #tpu.memory_space<vmem>>, %arg4: memref<64x16xf32, #tpu.memory_space<vmem>>, %arg5: memref<32x32xf32, #tpu.memory_space<vmem>>, %arg6: memref<1x8x32xf32, #tpu.memory_space<vmem>>) attributes {dimension_semantics = [#tpu.dimension_semantics<parallel>], iteration_bounds = array<i64: 2>, scalar_prefetch = 0 : i64, scratch_operands = 0 : i64, tpu.core_type = #tpu.core_type<tc>, window_params = [{transform_indices = @transform_0, window_bounds = array<i64: 1, 8, 16>}, {transform_indices = @transform_1, window_bounds = array<i64: 1, 8, 16>}, {pipeline_mode = #tpu.pipeline_mode<synchronous>, transform_indices = @transform_2, window_bounds = array<i64: 32, 16>}, {pipeline_mode = #tpu.pipeline_mode<synchronous>, transform_indices = @transform_3, window_bounds = array<i64: 64, 16>}, {pipeline_mode = #tpu.pipeline_mode<synchronous>, transform_indices = @transform_4, window_bounds = array<i64: 32, 32>}, {transform_indices = @transform_5, window_bounds = array<i64: 1, 8, 32>}]} {
    %c0 = arith.constant 0 : index
    %c0_0 = arith.constant 0 : index
    %0 = vector.load %arg3[%c0, %c0_0] : memref<32x16xf32, #tpu.memory_space<vmem>>, vector<32x16xf32>
    %c0_1 = arith.constant 0 : index
    %c0_2 = arith.constant 0 : index
    %1 = vector.load %arg4[%c0_1, %c0_2] : memref<64x16xf32, #tpu.memory_space<vmem>>, vector<64x16xf32>
    %c0_3 = arith.constant 0 : index
    %c0_4 = arith.constant 0 : index
    %2 = vector.load %arg5[%c0_3, %c0_4] : memref<32x32xf32, #tpu.memory_space<vmem>>, vector<32x32xf32>
    %c0_5 = arith.constant 0 : index
    %c0_6 = arith.constant 0 : index
    %c0_7 = arith.constant 0 : index
    %3 = vector.load %arg1[%c0_5, %c0_6, %c0_7] : memref<1x8x16xf32, #tpu.memory_space<vmem>>, vector<1x8x16xf32>
    %4 = vector.shape_cast %3 : vector<1x8x16xf32> to vector<8x16xf32>
    %c0_8 = arith.constant 0 : index
    %c0_9 = arith.constant 0 : index
    %c0_10 = arith.constant 0 : index
    %5 = vector.load %arg2[%c0_8, %c0_9, %c0_10] : memref<1x8x16xf32, #tpu.memory_space<vmem>>, vector<1x8x16xf32>
    %6 = vector.shape_cast %5 : vector<1x8x16xf32> to vector<8x16xf32>
    %cst = arith.constant dense<0.000000e+00> : vector<32x8xf32>
    %7 = tpu.matmul %0, %4, %cst {dimension_numbers = #tpu.dot_dimension_numbers<[1], [1], [0], [0], [0, 0, 1, 0], [], []>} : vector<32x16xf32>, vector<8x16xf32>, vector<32x8xf32> -> vector<32x8xf32>
    %cst_11 = arith.constant dense<0.000000e+00> : vector<64x8xf32>
    %8 = tpu.matmul %1, %6, %cst_11 {dimension_numbers = #tpu.dot_dimension_numbers<[1], [1], [0], [0], [0, 0, 1, 0], [], []>} : vector<64x16xf32>, vector<8x16xf32>, vector<64x8xf32> -> vector<64x8xf32>
    %9 = vector.extract_strided_slice %8 {offsets = [0, 0], sizes = [32, 8], strides = [1, 1]} : vector<64x8xf32> to vector<32x8xf32>
    %10 = vector.extract_strided_slice %8 {offsets = [32, 0], sizes = [32, 8], strides = [1, 1]} : vector<64x8xf32> to vector<32x8xf32>
    %11 = vector.shape_cast %7 : vector<32x8xf32> to vector<32x8x1xf32>
    %12 = vector.shape_cast %9 : vector<32x8xf32> to vector<32x1x8xf32>
    %13 = vector.broadcast %11 : vector<32x8x1xf32> to vector<32x8x8xf32>
    %14 = vector.broadcast %12 : vector<32x1x8xf32> to vector<32x8x8xf32>
    %15 = arith.addf %13, %14 : vector<32x8x8xf32>
    %16 = math.tanh %15 : vector<32x8x8xf32>
    %17 = vector.extract_strided_slice %16 {offsets = [0, 0, 0], sizes = [8, 8, 8], strides = [1, 1, 1]} : vector<32x8x8xf32> to vector<8x8x8xf32>
    %cst_12 = arith.constant dense<0.000000e+00> : vector<8x8xf32>
    %18 = vector.multi_reduction <add>, %17, %cst_12 [0] : vector<8x8x8xf32> to vector<8x8xf32>
    %19 = vector.extract_strided_slice %16 {offsets = [8, 0, 0], sizes = [8, 8, 8], strides = [1, 1, 1]} : vector<32x8x8xf32> to vector<8x8x8xf32>
    %cst_13 = arith.constant dense<0.000000e+00> : vector<8x8xf32>
    %20 = vector.multi_reduction <add>, %19, %cst_13 [0] : vector<8x8x8xf32> to vector<8x8xf32>
    %21 = vector.extract_strided_slice %16 {offsets = [16, 0, 0], sizes = [8, 8, 8], strides = [1, 1, 1]} : vector<32x8x8xf32> to vector<8x8x8xf32>
    %cst_14 = arith.constant dense<0.000000e+00> : vector<8x8xf32>
    %22 = vector.multi_reduction <add>, %21, %cst_14 [0] : vector<8x8x8xf32> to vector<8x8xf32>
    %23 = vector.extract_strided_slice %16 {offsets = [24, 0, 0], sizes = [8, 8, 8], strides = [1, 1, 1]} : vector<32x8x8xf32> to vector<8x8x8xf32>
    %cst_15 = arith.constant dense<0.000000e+00> : vector<8x8xf32>
    %24 = vector.multi_reduction <add>, %23, %cst_15 [0] : vector<8x8x8xf32> to vector<8x8xf32>
    %25 = vector.shape_cast %18 : vector<8x8xf32> to vector<1x8x8xf32>
    %26 = vector.shape_cast %20 : vector<8x8xf32> to vector<1x8x8xf32>
    %27 = vector.shape_cast %22 : vector<8x8xf32> to vector<1x8x8xf32>
    %28 = vector.shape_cast %24 : vector<8x8xf32> to vector<1x8x8xf32>
    %29 = tpu.concatenate %25, %26, %27, %28 in 0 : vector<1x8x8xf32>, vector<1x8x8xf32>, vector<1x8x8xf32>, vector<1x8x8xf32> -> vector<4x8x8xf32>
    %cst_16 = arith.constant dense<0xFF800000> : vector<4x8xf32>
    %30 = vector.multi_reduction <maximumf>, %29, %cst_16 [2] : vector<4x8x8xf32> to vector<4x8xf32>
    %31 = vector.shape_cast %30 : vector<4x8xf32> to vector<4x8x1xf32>
    %32 = vector.broadcast %31 : vector<4x8x1xf32> to vector<4x8x8xf32>
    %33 = arith.subf %29, %32 : vector<4x8x8xf32>
    %34 = math.exp %33 : vector<4x8x8xf32>
    %cst_17 = arith.constant dense<0.000000e+00> : vector<4x8xf32>
    %35 = vector.multi_reduction <add>, %34, %cst_17 [2] : vector<4x8x8xf32> to vector<4x8xf32>
    %36 = vector.shape_cast %35 : vector<4x8xf32> to vector<4x8x1xf32>
    %37 = vector.shape_cast %10 : vector<32x8xf32> to vector<4x8x8xf32>
    %cst_18 = arith.constant dense<0.000000e+00> : vector<4x8x8xf32>
    %38 = tpu.matmul %34, %37, %cst_18 {dimension_numbers = #tpu.dot_dimension_numbers<[2], [2], [1], [1], [0, 0, 0, 1, 1, 1], [0], [0]>} : vector<4x8x8xf32>, vector<4x8x8xf32>, vector<4x8x8xf32> -> vector<4x8x8xf32>
    %39 = tpu.reciprocal %36 {approx = true} : vector<4x8x1xf32> -> vector<4x8x1xf32>
    %40 = vector.broadcast %39 : vector<4x8x1xf32> to vector<4x8x8xf32>
    %41 = arith.mulf %38, %40 : vector<4x8x8xf32>
    %42 = vector.extract_strided_slice %41 {offsets = [0, 0, 0], sizes = [1, 8, 8], strides = [1, 1, 1]} : vector<4x8x8xf32> to vector<1x8x8xf32>
    %43 = vector.shape_cast %42 : vector<1x8x8xf32> to vector<8x8xf32>
    %44 = vector.extract_strided_slice %41 {offsets = [1, 0, 0], sizes = [1, 8, 8], strides = [1, 1, 1]} : vector<4x8x8xf32> to vector<1x8x8xf32>
    %45 = vector.shape_cast %44 : vector<1x8x8xf32> to vector<8x8xf32>
    %46 = vector.extract_strided_slice %41 {offsets = [2, 0, 0], sizes = [1, 8, 8], strides = [1, 1, 1]} : vector<4x8x8xf32> to vector<1x8x8xf32>
    %47 = vector.shape_cast %46 : vector<1x8x8xf32> to vector<8x8xf32>
    %48 = vector.extract_strided_slice %41 {offsets = [3, 0, 0], sizes = [1, 8, 8], strides = [1, 1, 1]} : vector<4x8x8xf32> to vector<1x8x8xf32>
    %49 = vector.shape_cast %48 : vector<1x8x8xf32> to vector<8x8xf32>
    %50 = tpu.concatenate %43, %45, %47, %49 in 1 : vector<8x8xf32>, vector<8x8xf32>, vector<8x8xf32>, vector<8x8xf32> -> vector<8x32xf32>
    %cst_19 = arith.constant dense<0.000000e+00> : vector<8x32xf32>
    %51 = tpu.matmul %50, %2, %cst_19 {dimension_numbers = #tpu.dot_dimension_numbers<[1], [1], [0], [0], [0, 0, 1, 0], [], []>} : vector<8x32xf32>, vector<32x32xf32>, vector<8x32xf32> -> vector<8x32xf32>
    %52 = vector.shape_cast %51 : vector<8x32xf32> to vector<1x8x32xf32>
    %c0_20 = arith.constant 0 : index
    %c0_21 = arith.constant 0 : index
    %c0_22 = arith.constant 0 : index
    %53 = vector.load %arg6[%c0_20, %c0_21, %c0_22] : memref<1x8x32xf32, #tpu.memory_space<vmem>>, vector<1x8x32xf32>
    tpu.vector_store %arg6[%c0_20, %c0_21, %c0_22], %52 {strides = array<i32>} : memref<1x8x32xf32, #tpu.memory_space<vmem>>, vector<1x8x32xf32>,
    return
  }
  func.func @transform_0(%arg0: i32) -> (i32, i32, i32) {
    %c0_i32 = arith.constant 0 : i32
    %c0_i32_0 = arith.constant 0 : i32
    %c0_i32_1 = arith.constant 0 : i32
    return %arg0, %c0_i32, %c0_i32_0 : i32, i32, i32
  }
  func.func @transform_1(%arg0: i32) -> (i32, i32, i32) {
    %c0_i32 = arith.constant 0 : i32
    %c0_i32_0 = arith.constant 0 : i32
    %c0_i32_1 = arith.constant 0 : i32
    return %arg0, %c0_i32, %c0_i32_0 : i32, i32, i32
  }
  func.func @transform_2(%arg0: i32) -> (i32, i32) {
    %c0_i32 = arith.constant 0 : i32
    %c0_i32_0 = arith.constant 0 : i32
    %c0_i32_1 = arith.constant 0 : i32
    return %c0_i32, %c0_i32_0 : i32, i32
  }
  func.func @transform_3(%arg0: i32) -> (i32, i32) {
    %c0_i32 = arith.constant 0 : i32
    %c0_i32_0 = arith.constant 0 : i32
    %c0_i32_1 = arith.constant 0 : i32
    return %c0_i32, %c0_i32_0 : i32, i32
  }
  func.func @transform_4(%arg0: i32) -> (i32, i32) {
    %c0_i32 = arith.constant 0 : i32
    %c0_i32_0 = arith.constant 0 : i32
    %c0_i32_1 = arith.constant 0 : i32
    return %c0_i32, %c0_i32_0 : i32, i32
  }
  func.func @transform_5(%arg0: i32) -> (i32, i32, i32) {
    %c0_i32 = arith.constant 0 : i32
    %c0_i32_0 = arith.constant 0 : i32
    %c0_i32_1 = arith.constant 0 : i32
    return %arg0, %c0_i32, %c0_i32_0 : i32, i32, i32
  }
}

</mosaic_0001>

<llo_original>
// kernel: tpu_custom_call.1
$region0: #{tpu_custom_call.1}
  #allocation0 [shape = 'u32[]', space=smem, size = 0x4, offset = 0x4, fixed_abs, tag = 'smem constant byte address 0x4 - core index']
  #allocation1 [shape = 'u32[144,128]{1,0:T(1,128)}', space=vmem, size = 0x12000, scoped, tag = 'internal scratch']
  %s0 = inlined_call_operand.vmem [shape: f32[2,8,16], index: 0, kind: input, shape index: {}]
  %s1 = inlined_call_operand.vmem [shape: f32[2,8,16], index: 1, kind: input, shape index: {}]
  %s2 = inlined_call_operand.vmem [shape: f32[32,16], index: 2, kind: input, shape index: {}]
  %s3 = inlined_call_operand.vmem [shape: f32[64,16], index: 3, kind: input, shape index: {}]
  %s4 = inlined_call_operand.vmem [shape: f32[32,32], index: 4, kind: input, shape index: {}]
  %s5 = inlined_call_operand.hbm [shape: f32[2,8,32], index: 5, kind: output, shape index: {}]
  %s6 = sld [smem:[#allocation0]]
  $region53: #{tpu_custom_call.1} parent=0
    _
  %s8 = ssub.s32 1, %s6
  %s9 = scalar_select 0, %s8, %s6
  $region1: #{tpu_custom_call.1} parent=0
    #allocation2 [shape = 'u8[8192]{0}', space=vmem, size = 0x2000, scoped, tag = 'output window, operand 0']
    #allocation3 [shape = 's32[2]{0}', space=sflag, size = 0x8, scoped, tag = 'scoped memory for tpu_custom_call.1']
    %10 = vsyncpa [#allocation3], 0
    %s11 = scalar_lea.sflag [#allocation3], 1
    %12 = vsyncpa %s11, 0
    loop: start=0, step=1, limit=4
    $region2: #{tpu_custom_call.1} parent=1 // loop_pre_header
      _
    $region3: #{tpu_custom_call.1} parent=1 // loop_header
      %s14 = sphi 0, %s18
      %p15 = scmp.ge.s32.totalorder %s14, 4
      %s24 = sphi 0, %s26
      %s27 = sphi 0, %s24
      %s28 = sphi 0, %s27
      %s44 = sphi 0, %s28
      %s50 = sphi 0, %s52
      %s53 = sphi 0, %s50
      %s54 = sphi 0, %s53
      %s70 = sphi 0, %s54
      %s74 = sphi 0, %s74
      %s76 = sphi 0, %s74
      %s77 = sphi 0, %s76
      %s91 = sphi 0, %s77
      %s95 = sphi 0, %s95
      %s97 = sphi 0, %s95
      %s98 = sphi 0, %s97
      %s112 = sphi 0, %s98
      %s116 = sphi 0, %s116
      %s118 = sphi 0, %s116
      %s119 = sphi 0, %s118
      %s133 = sphi 0, %s119
      %s139 = sphi 0, %s141
      %s142 = sphi 0, %s139
      %s143 = sphi 0, %s142
      %s159 = sphi 0, %s143
    $region4: #{tpu_custom_call.1} parent=1 // loop_header_branch
      %17 = sbr.rel (%p15) target = $region8
    $region5: #{tpu_custom_call.1} parent=1 // loop_body
      %s19 = ssub.s32 %s14, 1
      %s20 = ssub.s32 %s14, 2
      %s21 = sadd.s32 %s14, 1
      %s22 = ssub.s32 %s14, %s21
      %p23 = scmp.eq.s32.totalorder %s22, 0
      %s25 = sadd.s32 %s24, 1
      %s26 = scalar_select %p23, %s24, %s25
      %p29 = pneg %p23
      %p30 = scmp.eq.s32.totalorder %s14, 1
      %p31 = por %p29, %p30
      %p32 = scmp.ne.s32.totalorder %s24, %s27
      %p33 = scmp.eq.s32.totalorder %s14, 0
      %p34 = por %p32, %p33
      %p35 = scmp.ne.s32.totalorder %s24, %s27
      %p36 = scmp.eq.s32.totalorder %s19, 1
      %p37 = por %p35, %p36
      %p38 = scmp.ne.s32.totalorder %s27, %s28
      %p39 = scmp.eq.s32.totalorder %s19, 0
      %p40 = por %p38, %p39
      %p41 = scmp.ne.s32.totalorder %s27, %s28
      %p42 = scmp.eq.s32.totalorder %s20, 1
      %p43 = por %p41, %p42
      %p45 = scmp.ne.s32.totalorder %s28, %s44
      %p46 = scmp.eq.s32.totalorder %s20, 0
      %p47 = por %p45, %p46
      %s48 = ssub.s32 %s14, %s21
      %p49 = scmp.eq.s32.totalorder %s48, 0
      %s51 = sadd.s32 %s50, 1
      %s52 = scalar_select %p49, %s50, %s51
      %p55 = pneg %p49
      %p56 = scmp.eq.s32.totalorder %s14, 1
      %p57 = por %p55, %p56
      %p58 = scmp.ne.s32.totalorder %s50, %s53
      %p59 = scmp.eq.s32.totalorder %s14, 0
      %p60 = por %p58, %p59
      %p61 = scmp.ne.s32.totalorder %s50, %s53
      %p62 = scmp.eq.s32.totalorder %s19, 1
      %p63 = por %p61, %p62
      %p64 = scmp.ne.s32.totalorder %s53, %s54
      %p65 = scmp.eq.s32.totalorder %s19, 0
      %p66 = por %p64, %p65
      %p67 = scmp.ne.s32.totalorder %s53, %s54
      %p68 = scmp.eq.s32.totalorder %s20, 1
      %p69 = por %p67, %p68
      %p71 = scmp.ne.s32.totalorder %s54, %s70
      %p72 = scmp.eq.s32.totalorder %s20, 0
      %p73 = por %p71, %p72
      %s75 = sadd.s32 %s74, 1
      %p78 = scmp.eq.s32.totalorder %s14, 1
      %p79 = scmp.ne.s32.totalorder %s74, %s76
      %p80 = scmp.eq.s32.totalorder %s14, 0
      %p81 = por %p79, %p80
      %p82 = scmp.ne.s32.totalorder %s74, %s76
      %p83 = scmp.eq.s32.totalorder %s19, 1
      %p84 = por %p82, %p83
      %p85 = scmp.ne.s32.totalorder %s76, %s77
      %p86 = scmp.eq.s32.totalorder %s19, 0
      %p87 = por %p85, %p86
      %p88 = scmp.ne.s32.totalorder %s76, %s77
      %p89 = scmp.eq.s32.totalorder %s20, 1
      %p90 = por %p88, %p89
      %p92 = scmp.ne.s32.totalorder %s77, %s91
      %p93 = scmp.eq.s32.totalorder %s20, 0
      %p94 = por %p92, %p93
      %s96 = sadd.s32 %s95, 1
      %p99 = scmp.eq.s32.totalorder %s14, 1
      %p100 = scmp.ne.s32.totalorder %s95, %s97
      %p101 = scmp.eq.s32.totalorder %s14, 0
      %p102 = por %p100, %p101
      %p103 = scmp.ne.s32.totalorder %s95, %s97
      %p104 = scmp.eq.s32.totalorder %s19, 1
      %p105 = por %p103, %p104
      %p106 = scmp.ne.s32.totalorder %s97, %s98
      %p107 = scmp.eq.s32.totalorder %s19, 0
      %p108 = por %p106, %p107
      %p109 = scmp.ne.s32.totalorder %s97, %s98
      %p110 = scmp.eq.s32.totalorder %s20, 1
      %p111 = por %p109, %p110
      %p113 = scmp.ne.s32.totalorder %s98, %s112
      %p114 = scmp.eq.s32.totalorder %s20, 0
      %p115 = por %p113, %p114
      %s117 = sadd.s32 %s116, 1
      %p120 = scmp.eq.s32.totalorder %s14, 1
      %p121 = scmp.ne.s32.totalorder %s116, %s118
      %p122 = scmp.eq.s32.totalorder %s14, 0
      %p123 = por %p121, %p122
      %p124 = scmp.ne.s32.totalorder %s116, %s118
      %p125 = scmp.eq.s32.totalorder %s19, 1
      %p126 = por %p124, %p125
      %p127 = scmp.ne.s32.totalorder %s118, %s119
      %p128 = scmp.eq.s32.totalorder %s19, 0
      %p129 = por %p127, %p128
      %p130 = scmp.ne.s32.totalorder %s118, %s119
      %p131 = scmp.eq.s32.totalorder %s20, 1
      %p132 = por %p130, %p131
      %p134 = scmp.ne.s32.totalorder %s119, %s133
      %p135 = scmp.eq.s32.totalorder %s20, 0
      %p136 = por %p134, %p135
      %s137 = ssub.s32 %s14, %s21
      %p138 = scmp.eq.s32.totalorder %s137, 0
      %s140 = sadd.s32 %s139, 1
      %s141 = scalar_select %p138, %s139, %s140
      %p144 = pneg %p138
      %p145 = scmp.eq.s32.totalorder %s14, 1
      %p146 = por %p144, %p145
      %p147 = scmp.ne.s32.totalorder %s139, %s142
      %p148 = scmp.eq.s32.totalorder %s14, 0
      %p149 = por %p147, %p148
      %p150 = scmp.ne.s32.totalorder %s139, %s142
      %p151 = scmp.eq.s32.totalorder %s19, 1
      %p152 = por %p150, %p151
      %p153 = scmp.ne.s32.totalorder %s142, %s143
      %p154 = scmp.eq.s32.totalorder %s19, 0
      %p155 = por %p153, %p154
      %p156 = scmp.ne.s32.totalorder %s142, %s143
      %p157 = scmp.eq.s32.totalorder %s20, 1
      %p158 = por %p156, %p157
      %p160 = scmp.ne.s32.totalorder %s143, %s159
      %p161 = scmp.eq.s32.totalorder %s20, 0
      %p162 = por %p160, %p161
      %p163 = scmp.le.s32.totalorder 1, %s14
      %p164 = scmp.lt.s32.totalorder %s14, 3
      %p165 = pnand %p163, %p164
      %p166 = pneg %p165
      // Predicated region
      $region9: #{tpu_custom_call.1} parent=5 // pred_check
        _
      $region10: #{tpu_custom_call.1} parent=5 // pred_check_branch
        %168 = sbr.rel (%p165) target = $region12
      $region11: #{tpu_custom_call.1} parent=5 // pred_region
        %s169 = ssub.s32 %s14, 1
        // Predicated region
        $region13: #{tpu_custom_call.1} parent=11 // pred_check
          %p170 = pneg %p87
        $region14: #{tpu_custom_call.1} parent=11 // pred_check_branch
          %172 = sbr.rel (%p170) target = $region16
        $region15: #{tpu_custom_call.1} parent=11 // pred_region
          _
        $region16: #{tpu_custom_call.1} parent=11 // pred_fallthru
          _
        // Predicated region
        $region17: #{tpu_custom_call.1} parent=11 // pred_check
          %p173 = pneg %p108
        $region18: #{tpu_custom_call.1} parent=11 // pred_check_branch
          %175 = sbr.rel (%p173) target = $region20
        $region19: #{tpu_custom_call.1} parent=11 // pred_region
          _
        $region20: #{tpu_custom_call.1} parent=11 // pred_fallthru
          _
        // Predicated region
        $region21: #{tpu_custom_call.1} parent=11 // pred_check
          %p176 = pneg %p129
        $region22: #{tpu_custom_call.1} parent=11 // pred_check_branch
          %178 = sbr.rel (%p176) target = $region24
        $region23: #{tpu_custom_call.1} parent=11 // pred_region
          _
        $region24: #{tpu_custom_call.1} parent=11 // pred_fallthru
          _
      $region12: #{tpu_custom_call.1} parent=5 // pred_fallthru
        _
      %p179 = scmp.lt.s32.totalorder %s14, 2
      // Predicated region
      $region25: #{tpu_custom_call.1} parent=5 // pred_check
        %p180 = pneg %p179
      $region26: #{tpu_custom_call.1} parent=5 // pred_check_branch
        %182 = sbr.rel (%p180) target = $region28
      $region27: #{tpu_custom_call.1} parent=5 // pred_region
        // Predicated region
        $region29: #{tpu_custom_call.1} parent=27 // pred_check
          %p183 = pneg %p34
        $region30: #{tpu_custom_call.1} parent=27 // pred_check_branch
          %185 = sbr.rel (%p183) target = $region32
        $region31: #{tpu_custom_call.1} parent=27 // pred_region
          %p186 = scmp.lt.s32.totalorder %s14, 1
          %s187 = scalar_select %p186, %s14, 1
          %s188 = smul.addr %s187, 8
          %s189 = scalar_lea.vmem %s0, %s188
        $region32: #{tpu_custom_call.1} parent=27 // pred_fallthru
          _
        // Predicated region
        $region33: #{tpu_custom_call.1} parent=27 // pred_check
          %p190 = pneg %p60
        $region34: #{tpu_custom_call.1} parent=27 // pred_check_branch
          %192 = sbr.rel (%p190) target = $region36
        $region35: #{tpu_custom_call.1} parent=27 // pred_region
          %p193 = scmp.lt.s32.totalorder %s14, 1
          %s194 = scalar_select %p193, %s14, 1
          %s195 = smul.addr %s194, 8
          %s196 = scalar_lea.vmem %s1, %s195
        $region36: #{tpu_custom_call.1} parent=27 // pred_fallthru
          _
      $region28: #{tpu_custom_call.1} parent=5 // pred_fallthru
        _
      %p197 = scmp.le.s32.totalorder 1, %s14
      %p198 = scmp.lt.s32.totalorder %s14, 3
      %p199 = pnand %p197, %p198
      %p200 = pneg %p199
      // Predicated region
      $region37: #{tpu_custom_call.1} parent=5 // pred_check
        _
      $region38: #{tpu_custom_call.1} parent=5 // pred_check_branch
        %202 = sbr.rel (%p199) target = $region40
      $region39: #{tpu_custom_call.1} parent=5 // pred_region
        %s203 = ssub.s32 %s14, 1
        %p204 = scmp.lt.s32.totalorder %s19, 1
        %s205 = scalar_select %p204, %s19, 1
        %s206 = smul.addr %s205, 8
        %s207 = scalar_lea.vmem %s0, %s206
        %p208 = pneg %p40
        %p209 = pneg %p37
        %p210 = scmp.lt.s32.totalorder %s19, 1
        %s211 = scalar_select %p210, %s19, 1
        %s212 = smul.addr %s211, 8
        %s213 = scalar_lea.vmem %s1, %s212
        %p214 = pneg %p66
        %p215 = pneg %p63
        %p216 = pneg %p87
        %p217 = pneg %p84
        %p218 = pneg %p108
        %p219 = pneg %p105
        %p220 = pneg %p129
        %p221 = pneg %p126
        %p222 = pneg %p155
        %p223 = pneg %p152
        %s224 = sand.u32 %s142, 1
        %s225 = scalar_lea.sflag [#allocation3], %s224
        %s226 = sand.u32 %s142, 1
        %s227 = smul.addr %s226, 8
        %s228 = scalar_lea.vmem [#allocation2], %s227
        %p229 = scmp.lt.s32.totalorder %s19, 1
        %s230 = scalar_select %p229, %s19, 1
        %s231 = smul.addr %s230, 8
        %s232 = scalar_lea.vmem %s0, %s231
        %p233 = scmp.lt.s32.totalorder %s19, 1
        %s234 = scalar_select %p233, %s19, 1
        %s235 = smul.addr %s234, 8
        %s236 = scalar_lea.vmem %s1, %s235
        %v237 = vld [vmem:[%s2] sm:$0xff]
        %v238 = vld [vmem:[%s2 + $0x8] sm:$0xff]
        %v239 = vld [vmem:[%s2 + $0x10] sm:$0xff]
        %v240 = vld [vmem:[%s2 + $0x18] sm:$0xff]
        %v241 = vld [vmem:[%s3] sm:$0xff]
        %v242 = vld [vmem:[%s3 + $0x8] sm:$0xff]
        %v243 = vld [vmem:[%s3 + $0x10] sm:$0xff]
        %v244 = vld [vmem:[%s3 + $0x18] sm:$0xff]
        %v245 = vld [vmem:[%s3 + $0x20] sm:$0xff]
        %v246 = vld [vmem:[%s3 + $0x28] sm:$0xff]
        %v247 = vld [vmem:[%s3 + $0x30] sm:$0xff]
        %v248 = vld [vmem:[%s3 + $0x38] sm:$0xff]
        %v249 = vld [vmem:[%s4] sm:$0xff]
        %v250 = vld [vmem:[%s4 + $0x8] sm:$0xff]
        %v251 = vld [vmem:[%s4 + $0x10] sm:$0xff]
        %v252 = vld [vmem:[%s4 + $0x18] sm:$0xff]
        %v253 = vld [vmem:[%s232] sm:$0xff]
        %v254 = vld [vmem:[%s236] sm:$0xff]
        %vm255 = vcmask 130048
        %v257 = vsel %vm255, %v237, 0
        %v260 = vsel %vm255, %v238, 0
        %v263 = vsel %vm255, %v239, 0
        %v266 = vsel %vm255, %v240, 0
        %v269 = vsel %vm255, %v253, 0
        %271 = vmatprep.subr.mxu0 0.0
        %272 = vmatpush1.xpose.msra.mxu0 %v269
        %273 = vmatprep.subr.mxu0 0.0
        %274 = vmatpush1.xpose.msra.mxu0 0.0
        %275 = vmatprep.subr.mxu0 0.0
        %276 = vmatpush1.xpose.msra.mxu0 0.0
        %277 = vmatprep.subr.mxu0 0.0
        %278 = vmatpush1.xpose.msra.mxu0 0.0
        %279 = vmatprep.subr.mxu0 0.0
        %280 = vmatpush1.xpose.msra.mxu0 0.0
        %281 = vmatprep.subr.mxu0 0.0
        %282 = vmatpush1.xpose.msra.mxu0 0.0
        %283 = vmatprep.subr.mxu0 0.0
        %284 = vmatpush1.xpose.msra.mxu0 0.0
        %285 = vmatprep.subr.mxu0 0.0
        %286 = vmatpush1.xpose.msra.mxu0 0.0
        %287 = vmatprep.subr.mxu0 0.0
        %288 = vmatpush1.xpose.msra.mxu0 0.0
        %289 = vmatprep.subr.mxu0 0.0
        %290 = vmatpush1.xpose.msra.mxu0 0.0
        %291 = vmatprep.subr.mxu0 0.0
        %292 = vmatpush1.xpose.msra.mxu0 0.0
        %293 = vmatprep.subr.mxu0 0.0
        %294 = vmatpush1.xpose.msra.mxu0 0.0
        %295 = vmatprep.subr.mxu0 0.0
        %296 = vmatpush1.xpose.msra.mxu0 0.0
        %297 = vmatprep.subr.mxu0 0.0
        %298 = vmatpush1.xpose.msra.mxu0 0.0
        %299 = vmatprep.subr.mxu0 0.0
        %300 = vmatpush1.xpose.msra.mxu0 0.0
        %301 = vmatprep.subr.mxu0 0.0
        %302 = vmatpush1.xpose.msra.mxu0 0.0
        %303 = vmatprep.subr.mxu0 0.0
        %304 = vmatpush1.xpose.msra.mxu0 0.0
        %305 = vmatprep.subr.mxu0 0.0
        %306 = vmatpush1.xpose.msra.mxu0 0.0
        %307 = vmatprep.subr.mxu0 0.0
        %308 = vmatpush1.xpose.msra.mxu0 0.0
        %309 = vmatprep.subr.mxu0 0.0
        %310 = vmatpush1.xpose.msra.mxu0 0.0
        %311 = vmatprep.subr.mxu0 0.0
        %312 = vmatpush1.xpose.msra.mxu0 0.0
        %313 = vmatprep.subr.mxu0 0.0
        %314 = vmatpush1.xpose.msra.mxu0 0.0
        %315 = vmatprep.subr.mxu0 0.0
        %316 = vmatpush1.xpose.msra.mxu0 0.0
        %317 = vmatprep.subr.mxu0 0.0
        %318 = vmatpush1.xpose.msra.mxu0 0.0
        %319 = vmatprep.subr.mxu0 0.0
        %320 = vmatpush1.xpose.msra.mxu0 0.0
        %321 = vmatprep.subr.mxu0 0.0
        %322 = vmatpush1.xpose.msra.mxu0 0.0
        %323 = vmatprep.subr.mxu0 0.0
        %324 = vmatpush1.xpose.msra.mxu0 0.0
        %325 = vmatprep.subr.mxu0 0.0
        %326 = vmatpush1.xpose.msra.mxu0 0.0
        %327 = vmatprep.subr.mxu0 0.0
        %328 = vmatpush1.xpose.msra.mxu0 0.0
        %329 = vmatprep.subr.mxu0 0.0
        %330 = vmatpush1.xpose.msra.mxu0 0.0
        %331 = vmatprep.subr.mxu0 0.0
        %332 = vmatpush1.xpose.msra.mxu0 0.0
        %333 = vmatprep.subr.mxu0 0.0
        %334 = vmatpush1.xpose.msra.mxu0 0.0
        %335 = vmatprep.mubr.f32.mxu0 0.0
        %336 = vmatmul.mubr.f32.gmra.mrb[0].mxu0 %v257
        %v337 = vpop.f32.mrb[0].mxu0
        %v338 = vadd.f32 0.0, %v337
        %v339 = vpop.f32.mrb[0].mxu0
        %340 = vmatprep.mubr.f32.mxu0 0.0
        %341 = vmatmul.mubr.f32.gmra.mrb[0].mxu0 %v260
        %v342 = vpop.f32.mrb[0].mxu0
        %v343 = vadd.f32 0.0, %v342
        %v344 = vpop.f32.mrb[0].mxu0
        %345 = vmatprep.mubr.f32.mxu0 0.0
        %346 = vmatmul.mubr.f32.gmra.mrb[0].mxu0 %v263
        %v347 = vpop.f32.mrb[0].mxu0
        %v348 = vadd.f32 0.0, %v347
        %v349 = vpop.f32.mrb[0].mxu0
        %350 = vmatprep.mubr.f32.mxu0 0.0
        %351 = vmatmul.mubr.f32.gmra.mrb[0].mxu0 %v266
        %v352 = vpop.f32.mrb[0].mxu0
        %v353 = vadd.f32 0.0, %v352
        %v354 = vpop.f32.mrb[0].mxu0
        %355 = vdwg.mxu0
        %v357 = vsel %vm255, %v241, 0
        %v360 = vsel %vm255, %v242, 0
        %v363 = vsel %vm255, %v243, 0
        %v366 = vsel %vm255, %v244, 0
        %v369 = vsel %vm255, %v245, 0
        %v372 = vsel %vm255, %v246, 0
        %v375 = vsel %vm255, %v247, 0
        %v378 = vsel %vm255, %v248, 0
        %v381 = vsel %vm255, %v254, 0
        %383 = vmatprep.subr.mxu0 0.0
        %384 = vmatpush1.xpose.msra.mxu0 %v381
        %385 = vmatprep.subr.mxu0 0.0
        %386 = vmatpush1.xpose.msra.mxu0 0.0
        %387 = vmatprep.subr.mxu0 0.0
        %388 = vmatpush1.xpose.msra.mxu0 0.0
        %389 = vmatprep.subr.mxu0 0.0
        %390 = vmatpush1.xpose.msra.mxu0 0.0
        %391 = vmatprep.subr.mxu0 0.0
        %392 = vmatpush1.xpose.msra.mxu0 0.0
        %393 = vmatprep.subr.mxu0 0.0
        %394 = vmatpush1.xpose.msra.mxu0 0.0
        %395 = vmatprep.subr.mxu0 0.0
        %396 = vmatpush1.xpose.msra.mxu0 0.0
        %397 = vmatprep.subr.mxu0 0.0
        %398 = vmatpush1.xpose.msra.mxu0 0.0
        %399 = vmatprep.subr.mxu0 0.0
        %400 = vmatpush1.xpose.msra.mxu0 0.0
        %401 = vmatprep.subr.mxu0 0.0
        %402 = vmatpush1.xpose.msra.mxu0 0.0
        %403 = vmatprep.subr.mxu0 0.0
        %404 = vmatpush1.xpose.msra.mxu0 0.0
        %405 = vmatprep.subr.mxu0 0.0
        %406 = vmatpush1.xpose.msra.mxu0 0.0
        %407 = vmatprep.subr.mxu0 0.0
        %408 = vmatpush1.xpose.msra.mxu0 0.0
        %409 = vmatprep.subr.mxu0 0.0
        %410 = vmatpush1.xpose.msra.mxu0 0.0
        %411 = vmatprep.subr.mxu0 0.0
        %412 = vmatpush1.xpose.msra.mxu0 0.0
        %413 = vmatprep.subr.mxu0 0.0
        %414 = vmatpush1.xpose.msra.mxu0 0.0
        %415 = vmatprep.subr.mxu0 0.0
        %416 = vmatpush1.xpose.msra.mxu0 0.0
        %417 = vmatprep.subr.mxu0 0.0
        %418 = vmatpush1.xpose.msra.mxu0 0.0
        %419 = vmatprep.subr.mxu0 0.0
        %420 = vmatpush1.xpose.msra.mxu0 0.0
        %421 = vmatprep.subr.mxu0 0.0
        %422 = vmatpush1.xpose.msra.mxu0 0.0
        %423 = vmatprep.subr.mxu0 0.0
        %424 = vmatpush1.xpose.msra.mxu0 0.0
        %425 = vmatprep.subr.mxu0 0.0
        %426 = vmatpush1.xpose.msra.mxu0 0.0
        %427 = vmatprep.subr.mxu0 0.0
        %428 = vmatpush1.xpose.msra.mxu0 0.0
        %429 = vmatprep.subr.mxu0 0.0
        %430 = vmatpush1.xpose.msra.mxu0 0.0
        %431 = vmatprep.subr.mxu0 0.0
        %432 = vmatpush1.xpose.msra.mxu0 0.0
        %433 = vmatprep.subr.mxu0 0.0
        %434 = vmatpush1.xpose.msra.mxu0 0.0
        %435 = vmatprep.subr.mxu0 0.0
        %436 = vmatpush1.xpose.msra.mxu0 0.0
        %437 = vmatprep.subr.mxu0 0.0
        %438 = vmatpush1.xpose.msra.mxu0 0.0
        %439 = vmatprep.subr.mxu0 0.0
        %440 = vmatpush1.xpose.msra.mxu0 0.0
        %441 = vmatprep.subr.mxu0 0.0
        %442 = vmatpush1.xpose.msra.mxu0 0.0
        %443 = vmatprep.subr.mxu0 0.0
        %444 = vmatpush1.xpose.msra.mxu0 0.0
        %445 = vmatprep.subr.mxu0 0.0
        %446 = vmatpush1.xpose.msra.mxu0 0.0
        %447 = vmatprep.mubr.f32.mxu0 0.0
        %448 = vmatmul.mubr.f32.gmra.mrb[0].mxu0 %v357
        %v449 = vpop.f32.mrb[0].mxu0
        %v450 = vadd.f32 0.0, %v449
        %v451 = vpop.f32.mrb[0].mxu0
        %452 = vmatprep.mubr.f32.mxu0 0.0
        %453 = vmatmul.mubr.f32.gmra.mrb[0].mxu0 %v360
        %v454 = vpop.f32.mrb[0].mxu0
        %v455 = vadd.f32 0.0, %v454
        %v456 = vpop.f32.mrb[0].mxu0
        %457 = vmatprep.mubr.f32.mxu0 0.0
        %458 = vmatmul.mubr.f32.gmra.mrb[0].mxu0 %v363
        %v459 = vpop.f32.mrb[0].mxu0
        %v460 = vadd.f32 0.0, %v459
        %v461 = vpop.f32.mrb[0].mxu0
        %462 = vmatprep.mubr.f32.mxu0 0.0
        %463 = vmatmul.mubr.f32.gmra.mrb[0].mxu0 %v366
        %v464 = vpop.f32.mrb[0].mxu0
        %v465 = vadd.f32 0.0, %v464
        %v466 = vpop.f32.mrb[0].mxu0
        %467 = vmatprep.mubr.f32.mxu0 0.0
        %468 = vmatmul.mubr.f32.gmra.mrb[0].mxu0 %v369
        %v469 = vpop.f32.mrb[0].mxu0
        %v470 = vadd.f32 0.0, %v469
        %v471 = vpop.f32.mrb[0].mxu0
        %472 = vmatprep.mubr.f32.mxu0 0.0
        %473 = vmatmul.mubr.f32.gmra.mrb[0].mxu0 %v372
        %v474 = vpop.f32.mrb[0].mxu0
        %v475 = vadd.f32 0.0, %v474
        %v476 = vpop.f32.mrb[0].mxu0
        %477 = vmatprep.mubr.f32.mxu0 0.0
        %478 = vmatmul.mubr.f32.gmra.mrb[0].mxu0 %v375
        %v479 = vpop.f32.mrb[0].mxu0
        %v480 = vadd.f32 0.0, %v479
        %v481 = vpop.f32.mrb[0].mxu0
        %482 = vmatprep.mubr.f32.mxu0 0.0
        %483 = vmatmul.mubr.f32.gmra.mrb[0].mxu0 %v378
        %v484 = vpop.f32.mrb[0].mxu0
        %v485 = vadd.f32 0.0, %v484
        %v486 = vpop.f32.mrb[0].mxu0
        %487 = vdwg.mxu0
        %v488 = vlaneseq
        %v489 = vshrl.u32 %v488, 7
        %v490 = vsub.s32 0, %v489
        %v491 = vrot.slane %v338, %v490
        %493 = vbcast.lane.b32.xlu0 %v491, 256
        %v494 = vpop.permute.xlu0 %493
        %v495 = vlaneseq
        %v496 = vshrl.u32 %v495, 7
        %v497 = vsub.s32 1, %v496
        %v498 = vrot.slane %v338, %v497
        %500 = vbcast.lane.b32.xlu0 %v498, 256
        %v501 = vpop.permute.xlu0 %500
        %v502 = vlaneseq
        %v503 = vshrl.u32 %v502, 7
        %v504 = vsub.s32 2, %v503
        %v505 = vrot.slane %v338, %v504
        %507 = vbcast.lane.b32.xlu0 %v505, 256
        %v508 = vpop.permute.xlu0 %507
        %v509 = vlaneseq
        %v510 = vshrl.u32 %v509, 7
        %v511 = vsub.s32 3, %v510
        %v512 = vrot.slane %v338, %v511
        %514 = vbcast.lane.b32.xlu0 %v512, 256
        %v515 = vpop.permute.xlu0 %514
        %v516 = vlaneseq
        %v517 = vshrl.u32 %v516, 7
        %v518 = vsub.s32 4, %v517
        %v519 = vrot.slane %v338, %v518
        %521 = vbcast.lane.b32.xlu0 %v519, 256
        %v522 = vpop.permute.xlu0 %521
        %v523 = vlaneseq
        %v524 = vshrl.u32 %v523, 7
        %v525 = vsub.s32 5, %v524
        %v526 = vrot.slane %v338, %v525
        %528 = vbcast.lane.b32.xlu0 %v526, 256
        %v529 = vpop.permute.xlu0 %528
        %v530 = vlaneseq
        %v531 = vshrl.u32 %v530, 7
        %v532 = vsub.s32 6, %v531
        %v533 = vrot.slane %v338, %v532
        %535 = vbcast.lane.b32.xlu0 %v533, 256
        %v536 = vpop.permute.xlu0 %535
        %v537 = vlaneseq
        %v538 = vshrl.u32 %v537, 7
        %v539 = vsub.s32 7, %v538
        %v540 = vrot.slane %v338, %v539
        %542 = vbcast.lane.b32.xlu0 %v540, 256
        %v543 = vpop.permute.xlu0 %542
        %v544 = vlaneseq
        %v545 = vshrl.u32 %v544, 7
        %v546 = vsub.s32 0, %v545
        %v547 = vrot.slane %v343, %v546
        %549 = vbcast.lane.b32.xlu0 %v547, 256
        %v550 = vpop.permute.xlu0 %549
        %v551 = vlaneseq
        %v552 = vshrl.u32 %v551, 7
        %v553 = vsub.s32 1, %v552
        %v554 = vrot.slane %v343, %v553
        %556 = vbcast.lane.b32.xlu0 %v554, 256
        %v557 = vpop.permute.xlu0 %556
        %v558 = vlaneseq
        %v559 = vshrl.u32 %v558, 7
        %v560 = vsub.s32 2, %v559
        %v561 = vrot.slane %v343, %v560
        %563 = vbcast.lane.b32.xlu0 %v561, 256
        %v564 = vpop.permute.xlu0 %563
        %v565 = vlaneseq
        %v566 = vshrl.u32 %v565, 7
        %v567 = vsub.s32 3, %v566
        %v568 = vrot.slane %v343, %v567
        %570 = vbcast.lane.b32.xlu0 %v568, 256
        %v571 = vpop.permute.xlu0 %570
        %v572 = vlaneseq
        %v573 = vshrl.u32 %v572, 7
        %v574 = vsub.s32 4, %v573
        %v575 = vrot.slane %v343, %v574
        %577 = vbcast.lane.b32.xlu0 %v575, 256
        %v578 = vpop.permute.xlu0 %577
        %v579 = vlaneseq
        %v580 = vshrl.u32 %v579, 7
        %v581 = vsub.s32 5, %v580
        %v582 = vrot.slane %v343, %v581
        %584 = vbcast.lane.b32.xlu0 %v582, 256
        %v585 = vpop.permute.xlu0 %584
        %v586 = vlaneseq
        %v587 = vshrl.u32 %v586, 7
        %v588 = vsub.s32 6, %v587
        %v589 = vrot.slane %v343, %v588
        %591 = vbcast.lane.b32.xlu0 %v589, 256
        %v592 = vpop.permute.xlu0 %591
        %v593 = vlaneseq
        %v594 = vshrl.u32 %v593, 7
        %v595 = vsub.s32 7, %v594
        %v596 = vrot.slane %v343, %v595
        %598 = vbcast.lane.b32.xlu0 %v596, 256
        %v599 = vpop.permute.xlu0 %598
        %v600 = vlaneseq
        %v601 = vshrl.u32 %v600, 7
        %v602 = vsub.s32 0, %v601
        %v603 = vrot.slane %v348, %v602
        %605 = vbcast.lane.b32.xlu0 %v603, 256
        %v606 = vpop.permute.xlu0 %605
        %v607 = vlaneseq
        %v608 = vshrl.u32 %v607, 7
        %v609 = vsub.s32 1, %v608
        %v610 = vrot.slane %v348, %v609
        %612 = vbcast.lane.b32.xlu0 %v610, 256
        %v613 = vpop.permute.xlu0 %612
        %v614 = vlaneseq
        %v615 = vshrl.u32 %v614, 7
        %v616 = vsub.s32 2, %v615
        %v617 = vrot.slane %v348, %v616
        %619 = vbcast.lane.b32.xlu0 %v617, 256
        %v620 = vpop.permute.xlu0 %619
        %v621 = vlaneseq
        %v622 = vshrl.u32 %v621, 7
        %v623 = vsub.s32 3, %v622
        %v624 = vrot.slane %v348, %v623
        %626 = vbcast.lane.b32.xlu0 %v624, 256
        %v627 = vpop.permute.xlu0 %626
        %v628 = vlaneseq
        %v629 = vshrl.u32 %v628, 7
        %v630 = vsub.s32 4, %v629
        %v631 = vrot.slane %v348, %v630
        %633 = vbcast.lane.b32.xlu0 %v631, 256
        %v634 = vpop.permute.xlu0 %633
        %v635 = vlaneseq
        %v636 = vshrl.u32 %v635, 7
        %v637 = vsub.s32 5, %v636
        %v638 = vrot.slane %v348, %v637
        %640 = vbcast.lane.b32.xlu0 %v638, 256
        %v641 = vpop.permute.xlu0 %640
        %v642 = vlaneseq
        %v643 = vshrl.u32 %v642, 7
        %v644 = vsub.s32 6, %v643
        %v645 = vrot.slane %v348, %v644
        %647 = vbcast.lane.b32.xlu0 %v645, 256
        %v648 = vpop.permute.xlu0 %647
        %v649 = vlaneseq
        %v650 = vshrl.u32 %v649, 7
        %v651 = vsub.s32 7, %v650
        %v652 = vrot.slane %v348, %v651
        %654 = vbcast.lane.b32.xlu0 %v652, 256
        %v655 = vpop.permute.xlu0 %654
        %v656 = vlaneseq
        %v657 = vshrl.u32 %v656, 7
        %v658 = vsub.s32 0, %v657
        %v659 = vrot.slane %v353, %v658
        %661 = vbcast.lane.b32.xlu0 %v659, 256
        %v662 = vpop.permute.xlu0 %661
        %v663 = vlaneseq
        %v664 = vshrl.u32 %v663, 7
        %v665 = vsub.s32 1, %v664
        %v666 = vrot.slane %v353, %v665
        %668 = vbcast.lane.b32.xlu0 %v666, 256
        %v669 = vpop.permute.xlu0 %668
        %v670 = vlaneseq
        %v671 = vshrl.u32 %v670, 7
        %v672 = vsub.s32 2, %v671
        %v673 = vrot.slane %v353, %v672
        %675 = vbcast.lane.b32.xlu0 %v673, 256
        %v676 = vpop.permute.xlu0 %675
        %v677 = vlaneseq
        %v678 = vshrl.u32 %v677, 7
        %v679 = vsub.s32 3, %v678
        %v680 = vrot.slane %v353, %v679
        %682 = vbcast.lane.b32.xlu0 %v680, 256
        %v683 = vpop.permute.xlu0 %682
        %v684 = vlaneseq
        %v685 = vshrl.u32 %v684, 7
        %v686 = vsub.s32 4, %v685
        %v687 = vrot.slane %v353, %v686
        %689 = vbcast.lane.b32.xlu0 %v687, 256
        %v690 = vpop.permute.xlu0 %689
        %v691 = vlaneseq
        %v692 = vshrl.u32 %v691, 7
        %v693 = vsub.s32 5, %v692
        %v694 = vrot.slane %v353, %v693
        %696 = vbcast.lane.b32.xlu0 %v694, 256
        %v697 = vpop.permute.xlu0 %696
        %v698 = vlaneseq
        %v699 = vshrl.u32 %v698, 7
        %v700 = vsub.s32 6, %v699
        %v701 = vrot.slane %v353, %v700
        %703 = vbcast.lane.b32.xlu0 %v701, 256
        %v704 = vpop.permute.xlu0 %703
        %v705 = vlaneseq
        %v706 = vshrl.u32 %v705, 7
        %v707 = vsub.s32 7, %v706
        %v708 = vrot.slane %v353, %v707
        %710 = vbcast.lane.b32.xlu0 %v708, 256
        %v711 = vpop.permute.xlu0 %710
        %v716 = vcombine.high %v450, %v450
        %v718 = vunpack.c.l.s4 1966171168
        %v719 = vunpack.c.0.s8 %v718
        %v720 = vlaneseq
        %v721 = vshrl.u32 %v720, 7
        %v722 = vsub.s32 %v719, %v721
        %v723 = vrot.slane %v450, %v722
        %v725 = vunpack.c.l.s4 1966171168
        %v726 = vunpack.c.0.s8 %v725
        %v727 = vlaneseq
        %v728 = vshrl.u32 %v727, 7
        %v729 = vsub.s32 %v726, %v728
        %v730 = vrot.slane %v716, %v729
        %v731 = vcombine.high %v723, %v723
        %v732 = vcombine.high %v730, %v730
        %v734 = vunpack.c.l.s4 1966171168
        %v735 = vunpack.c.0.s8 %v734
        %v736 = vlaneseq
        %v737 = vshrl.u32 %v736, 7
        %v738 = vsub.s32 %v735, %v737
        %v739 = vrot.slane %v723, %v738
        %v741 = vunpack.c.l.s4 1966171168
        %v742 = vunpack.c.0.s8 %v741
        %v743 = vlaneseq
        %v744 = vshrl.u32 %v743, 7
        %v745 = vsub.s32 %v742, %v744
        %v746 = vrot.slane %v730, %v745
        %v748 = vunpack.c.l.s4 1966171168
        %v749 = vunpack.c.0.s8 %v748
        %v750 = vlaneseq
        %v751 = vshrl.u32 %v750, 7
        %v752 = vsub.s32 %v749, %v751
        %v753 = vrot.slane %v731, %v752
        %v755 = vunpack.c.l.s4 1966171168
        %v756 = vunpack.c.0.s8 %v755
        %v757 = vlaneseq
        %v758 = vshrl.u32 %v757, 7
        %v759 = vsub.s32 %v756, %v758
        %v760 = vrot.slane %v732, %v759
        %v761 = vcombine.high %v739, %v739
        %v762 = vcombine.high %v746, %v746
        %v763 = vcombine.high %v753, %v753
        %v764 = vcombine.high %v760, %v760
        %v765 = vcombine.high %v455, %v455
        %v767 = vunpack.c.l.s4 1966171168
        %v768 = vunpack.c.0.s8 %v767
        %v769 = vlaneseq
        %v770 = vshrl.u32 %v769, 7
        %v771 = vsub.s32 %v768, %v770
        %v772 = vrot.slane %v455, %v771
        %v774 = vunpack.c.l.s4 1966171168
        %v775 = vunpack.c.0.s8 %v774
        %v776 = vlaneseq
        %v777 = vshrl.u32 %v776, 7
        %v778 = vsub.s32 %v775, %v777
        %v779 = vrot.slane %v765, %v778
        %v780 = vcombine.high %v772, %v772
        %v781 = vcombine.high %v779, %v779
        %v783 = vunpack.c.l.s4 1966171168
        %v784 = vunpack.c.0.s8 %v783
        %v785 = vlaneseq
        %v786 = vshrl.u32 %v785, 7
        %v787 = vsub.s32 %v784, %v786
        %v788 = vrot.slane %v772, %v787
        %v790 = vunpack.c.l.s4 1966171168
        %v791 = vunpack.c.0.s8 %v790
        %v792 = vlaneseq
        %v793 = vshrl.u32 %v792, 7
        %v794 = vsub.s32 %v791, %v793
        %v795 = vrot.slane %v779, %v794
        %v797 = vunpack.c.l.s4 1966171168
        %v798 = vunpack.c.0.s8 %v797
        %v799 = vlaneseq
        %v800 = vshrl.u32 %v799, 7
        %v801 = vsub.s32 %v798, %v800
        %v802 = vrot.slane %v780, %v801
        %v804 = vunpack.c.l.s4 1966171168
        %v805 = vunpack.c.0.s8 %v804
        %v806 = vlaneseq
        %v807 = vshrl.u32 %v806, 7
        %v808 = vsub.s32 %v805, %v807
        %v809 = vrot.slane %v781, %v808
        %v810 = vcombine.high %v788, %v788
        %v811 = vcombine.high %v795, %v795
        %v812 = vcombine.high %v802, %v802
        %v813 = vcombine.high %v809, %v809
        %v814 = vcombine.high %v460, %v460
        %v816 = vunpack.c.l.s4 1966171168
        %v817 = vunpack.c.0.s8 %v816
        %v818 = vlaneseq
        %v819 = vshrl.u32 %v818, 7
        %v820 = vsub.s32 %v817, %v819
        %v821 = vrot.slane %v460, %v820
        %v823 = vunpack.c.l.s4 1966171168
        %v824 = vunpack.c.0.s8 %v823
        %v825 = vlaneseq
        %v826 = vshrl.u32 %v825, 7
        %v827 = vsub.s32 %v824, %v826
        %v828 = vrot.slane %v814, %v827
        %v829 = vcombine.high %v821, %v821
        %v830 = vcombine.high %v828, %v828
        %v832 = vunpack.c.l.s4 1966171168
        %v833 = vunpack.c.0.s8 %v832
        %v834 = vlaneseq
        %v835 = vshrl.u32 %v834, 7
        %v836 = vsub.s32 %v833, %v835
        %v837 = vrot.slane %v821, %v836
        %v839 = vunpack.c.l.s4 1966171168
        %v840 = vunpack.c.0.s8 %v839
        %v841 = vlaneseq
        %v842 = vshrl.u32 %v841, 7
        %v843 = vsub.s32 %v840, %v842
        %v844 = vrot.slane %v828, %v843
        %v846 = vunpack.c.l.s4 1966171168
        %v847 = vunpack.c.0.s8 %v846
        %v848 = vlaneseq
        %v849 = vshrl.u32 %v848, 7
        %v850 = vsub.s32 %v847, %v849
        %v851 = vrot.slane %v829, %v850
        %v853 = vunpack.c.l.s4 1966171168
        %v854 = vunpack.c.0.s8 %v853
        %v855 = vlaneseq
        %v856 = vshrl.u32 %v855, 7
        %v857 = vsub.s32 %v854, %v856
        %v858 = vrot.slane %v830, %v857
        %v859 = vcombine.high %v837, %v837
        %v860 = vcombine.high %v844, %v844
        %v861 = vcombine.high %v851, %v851
        %v862 = vcombine.high %v858, %v858
        %v863 = vcombine.high %v465, %v465
        %v865 = vunpack.c.l.s4 1966171168
        %v866 = vunpack.c.0.s8 %v865
        %v867 = vlaneseq
        %v868 = vshrl.u32 %v867, 7
        %v869 = vsub.s32 %v866, %v868
        %v870 = vrot.slane %v465, %v869
        %v872 = vunpack.c.l.s4 1966171168
        %v873 = vunpack.c.0.s8 %v872
        %v874 = vlaneseq
        %v875 = vshrl.u32 %v874, 7
        %v876 = vsub.s32 %v873, %v875
        %v877 = vrot.slane %v863, %v876
        %v878 = vcombine.high %v870, %v870
        %v879 = vcombine.high %v877, %v877
        %v881 = vunpack.c.l.s4 1966171168
        %v882 = vunpack.c.0.s8 %v881
        %v883 = vlaneseq
        %v884 = vshrl.u32 %v883, 7
        %v885 = vsub.s32 %v882, %v884
        %v886 = vrot.slane %v870, %v885
        %v888 = vunpack.c.l.s4 1966171168
        %v889 = vunpack.c.0.s8 %v888
        %v890 = vlaneseq
        %v891 = vshrl.u32 %v890, 7
        %v892 = vsub.s32 %v889, %v891
        %v893 = vrot.slane %v877, %v892
        %v895 = vunpack.c.l.s4 1966171168
        %v896 = vunpack.c.0.s8 %v895
        %v897 = vlaneseq
        %v898 = vshrl.u32 %v897, 7
        %v899 = vsub.s32 %v896, %v898
        %v900 = vrot.slane %v878, %v899
        %v902 = vunpack.c.l.s4 1966171168
        %v903 = vunpack.c.0.s8 %v902
        %v904 = vlaneseq
        %v905 = vshrl.u32 %v904, 7
        %v906 = vsub.s32 %v903, %v905
        %v907 = vrot.slane %v879, %v906
        %v908 = vcombine.high %v886, %v886
        %v909 = vcombine.high %v893, %v893
        %v910 = vcombine.high %v900, %v900
        %v911 = vcombine.high %v907, %v907
        %v912 = vlaneseq
        %v913 = vshrl.u32 %v912, 7
        %v914 = vsub.s32 0, %v913
        %v915 = vrot.slane %v739, %v914
        %v916 = vlaneseq
        %v917 = vshrl.u32 %v916, 7
        %v918 = vsub.s32 0, %v917
        %v919 = vrot.slane %v753, %v918
        %v920 = vlaneseq
        %v921 = vshrl.u32 %v920, 7
        %v922 = vsub.s32 0, %v921
        %v923 = vrot.slane %v761, %v922
        %v924 = vlaneseq
        %v925 = vshrl.u32 %v924, 7
        %v926 = vsub.s32 0, %v925
        %v927 = vrot.slane %v763, %v926
        %v928 = vlaneseq
        %v929 = vshrl.u32 %v928, 7
        %v930 = vsub.s32 0, %v929
        %v931 = vrot.slane %v746, %v930
        %v932 = vlaneseq
        %v933 = vshrl.u32 %v932, 7
        %v934 = vsub.s32 0, %v933
        %v935 = vrot.slane %v760, %v934
        %v936 = vlaneseq
        %v937 = vshrl.u32 %v936, 7
        %v938 = vsub.s32 0, %v937
        %v939 = vrot.slane %v762, %v938
        %v940 = vlaneseq
        %v941 = vshrl.u32 %v940, 7
        %v942 = vsub.s32 0, %v941
        %v943 = vrot.slane %v764, %v942
        %v944 = vlaneseq
        %v945 = vshrl.u32 %v944, 7
        %v946 = vsub.s32 0, %v945
        %v947 = vrot.slane %v788, %v946
        %v948 = vlaneseq
        %v949 = vshrl.u32 %v948, 7
        %v950 = vsub.s32 0, %v949
        %v951 = vrot.slane %v802, %v950
        %v952 = vlaneseq
        %v953 = vshrl.u32 %v952, 7
        %v954 = vsub.s32 0, %v953
        %v955 = vrot.slane %v810, %v954
        %v956 = vlaneseq
        %v957 = vshrl.u32 %v956, 7
        %v958 = vsub.s32 0, %v957
        %v959 = vrot.slane %v812, %v958
        %v960 = vlaneseq
        %v961 = vshrl.u32 %v960, 7
        %v962 = vsub.s32 0, %v961
        %v963 = vrot.slane %v795, %v962
        %v964 = vlaneseq
        %v965 = vshrl.u32 %v964, 7
        %v966 = vsub.s32 0, %v965
        %v967 = vrot.slane %v809, %v966
        %v968 = vlaneseq
        %v969 = vshrl.u32 %v968, 7
        %v970 = vsub.s32 0, %v969
        %v971 = vrot.slane %v811, %v970
        %v972 = vlaneseq
        %v973 = vshrl.u32 %v972, 7
        %v974 = vsub.s32 0, %v973
        %v975 = vrot.slane %v813, %v974
        %v976 = vlaneseq
        %v977 = vshrl.u32 %v976, 7
        %v978 = vsub.s32 0, %v977
        %v979 = vrot.slane %v837, %v978
        %v980 = vlaneseq
        %v981 = vshrl.u32 %v980, 7
        %v982 = vsub.s32 0, %v981
        %v983 = vrot.slane %v851, %v982
        %v984 = vlaneseq
        %v985 = vshrl.u32 %v984, 7
        %v986 = vsub.s32 0, %v985
        %v987 = vrot.slane %v859, %v986
        %v988 = vlaneseq
        %v989 = vshrl.u32 %v988, 7
        %v990 = vsub.s32 0, %v989
        %v991 = vrot.slane %v861, %v990
        %v992 = vlaneseq
        %v993 = vshrl.u32 %v992, 7
        %v994 = vsub.s32 0, %v993
        %v995 = vrot.slane %v844, %v994
        %v996 = vlaneseq
        %v997 = vshrl.u32 %v996, 7
        %v998 = vsub.s32 0, %v997
        %v999 = vrot.slane %v858, %v998
        %v1000 = vlaneseq
        %v1001 = vshrl.u32 %v1000, 7
        %v1002 = vsub.s32 0, %v1001
        %v1003 = vrot.slane %v860, %v1002
        %v1004 = vlaneseq
        %v1005 = vshrl.u32 %v1004, 7
        %v1006 = vsub.s32 0, %v1005
        %v1007 = vrot.slane %v862, %v1006
        %v1008 = vlaneseq
        %v1009 = vshrl.u32 %v1008, 7
        %v1010 = vsub.s32 0, %v1009
        %v1011 = vrot.slane %v886, %v1010
        %v1012 = vlaneseq
        %v1013 = vshrl.u32 %v1012, 7
        %v1014 = vsub.s32 0, %v1013
        %v1015 = vrot.slane %v900, %v1014
        %v1016 = vlaneseq
        %v1017 = vshrl.u32 %v1016, 7
        %v1018 = vsub.s32 0, %v1017
        %v1019 = vrot.slane %v908, %v1018
        %v1020 = vlaneseq
        %v1021 = vshrl.u32 %v1020, 7
        %v1022 = vsub.s32 0, %v1021
        %v1023 = vrot.slane %v910, %v1022
        %v1024 = vlaneseq
        %v1025 = vshrl.u32 %v1024, 7
        %v1026 = vsub.s32 0, %v1025
        %v1027 = vrot.slane %v893, %v1026
        %v1028 = vlaneseq
        %v1029 = vshrl.u32 %v1028, 7
        %v1030 = vsub.s32 0, %v1029
        %v1031 = vrot.slane %v907, %v1030
        %v1032 = vlaneseq
        %v1033 = vshrl.u32 %v1032, 7
        %v1034 = vsub.s32 0, %v1033
        %v1035 = vrot.slane %v909, %v1034
        %v1036 = vlaneseq
        %v1037 = vshrl.u32 %v1036, 7
        %v1038 = vsub.s32 0, %v1037
        %v1039 = vrot.slane %v911, %v1038
        %v1072 = vadd.f32 %v494, %v915
        %v1073 = vadd.f32 %v501, %v919
        %v1074 = vadd.f32 %v508, %v923
        %v1075 = vadd.f32 %v515, %v927
        %v1076 = vadd.f32 %v522, %v931
        %v1077 = vadd.f32 %v529, %v935
        %v1078 = vadd.f32 %v536, %v939
        %v1079 = vadd.f32 %v543, %v943
        %v1080 = vadd.f32 %v550, %v947
        %v1081 = vadd.f32 %v557, %v951
        %v1082 = vadd.f32 %v564, %v955
        %v1083 = vadd.f32 %v571, %v959
        %v1084 = vadd.f32 %v578, %v963
        %v1085 = vadd.f32 %v585, %v967
        %v1086 = vadd.f32 %v592, %v971
        %v1087 = vadd.f32 %v599, %v975
        %v1088 = vadd.f32 %v606, %v979
        %v1089 = vadd.f32 %v613, %v983
        %v1090 = vadd.f32 %v620, %v987
        %v1091 = vadd.f32 %v627, %v991
        %v1092 = vadd.f32 %v634, %v995
        %v1093 = vadd.f32 %v641, %v999
        %v1094 = vadd.f32 %v648, %v1003
        %v1095 = vadd.f32 %v655, %v1007
        %v1096 = vadd.f32 %v662, %v1011
        %v1097 = vadd.f32 %v669, %v1015
        %v1098 = vadd.f32 %v676, %v1019
        %v1099 = vadd.f32 %v683, %v1023
        %v1100 = vadd.f32 %v690, %v1027
        %v1101 = vadd.f32 %v697, %v1031
        %v1102 = vadd.f32 %v704, %v1035
        %v1103 = vadd.f32 %v711, %v1039
        %v1104 = vtanh.pop %v1072
        %v1105 = vtanh.pop %v1073
        %v1106 = vtanh.pop %v1074
        %v1107 = vtanh.pop %v1075
        %v1108 = vtanh.pop %v1076
        %v1109 = vtanh.pop %v1077
        %v1110 = vtanh.pop %v1078
        %v1111 = vtanh.pop %v1079
        %v1112 = vtanh.pop %v1080
        %v1113 = vtanh.pop %v1081
        %v1114 = vtanh.pop %v1082
        %v1115 = vtanh.pop %v1083
        %v1116 = vtanh.pop %v1084
        %v1117 = vtanh.pop %v1085
        %v1118 = vtanh.pop %v1086
        %v1119 = vtanh.pop %v1087
        %v1120 = vtanh.pop %v1088
        %v1121 = vtanh.pop %v1089
        %v1122 = vtanh.pop %v1090
        %v1123 = vtanh.pop %v1091
        %v1124 = vtanh.pop %v1092
        %v1125 = vtanh.pop %v1093
        %v1126 = vtanh.pop %v1094
        %v1127 = vtanh.pop %v1095
        %v1128 = vtanh.pop %v1096
        %v1129 = vtanh.pop %v1097
        %v1130 = vtanh.pop %v1098
        %v1131 = vtanh.pop %v1099
        %v1132 = vtanh.pop %v1100
        %v1133 = vtanh.pop %v1101
        %v1134 = vtanh.pop %v1102
        %v1135 = vtanh.pop %v1103
        %vm1136 = vcmask 64512
        %v1137 = vsel %vm1136, %v1104, 0.0
        %v1138 = vsel %vm1136, %v1105, 0.0
        %v1139 = vadd.f32 %v1137, %v1138
        %v1140 = vsel %vm1136, %v1106, 0.0
        %v1141 = vadd.f32 %v1139, %v1140
        %v1142 = vsel %vm1136, %v1107, 0.0
        %v1143 = vadd.f32 %v1141, %v1142
        %v1144 = vsel %vm1136, %v1108, 0.0
        %v1145 = vadd.f32 %v1143, %v1144
        %v1146 = vsel %vm1136, %v1109, 0.0
        %v1147 = vadd.f32 %v1145, %v1146
        %v1148 = vsel %vm1136, %v1110, 0.0
        %v1149 = vadd.f32 %v1147, %v1148
        %v1150 = vsel %vm1136, %v1111, 0.0
        %v1151 = vadd.f32 %v1149, %v1150
        %v1152 = vsel %vm1136, %v1112, 0.0
        %v1153 = vsel %vm1136, %v1113, 0.0
        %v1154 = vadd.f32 %v1152, %v1153
        %v1155 = vsel %vm1136, %v1114, 0.0
        %v1156 = vadd.f32 %v1154, %v1155
        %v1157 = vsel %vm1136, %v1115, 0.0
        %v1158 = vadd.f32 %v1156, %v1157
        %v1159 = vsel %vm1136, %v1116, 0.0
        %v1160 = vadd.f32 %v1158, %v1159
        %v1161 = vsel %vm1136, %v1117, 0.0
        %v1162 = vadd.f32 %v1160, %v1161
        %v1163 = vsel %vm1136, %v1118, 0.0
        %v1164 = vadd.f32 %v1162, %v1163
        %v1165 = vsel %vm1136, %v1119, 0.0
        %v1166 = vadd.f32 %v1164, %v1165
        %v1167 = vsel %vm1136, %v1120, 0.0
        %v1168 = vsel %vm1136, %v1121, 0.0
        %v1169 = vadd.f32 %v1167, %v1168
        %v1170 = vsel %vm1136, %v1122, 0.0
        %v1171 = vadd.f32 %v1169, %v1170
        %v1172 = vsel %vm1136, %v1123, 0.0
        %v1173 = vadd.f32 %v1171, %v1172
        %v1174 = vsel %vm1136, %v1124, 0.0
        %v1175 = vadd.f32 %v1173, %v1174
        %v1176 = vsel %vm1136, %v1125, 0.0
        %v1177 = vadd.f32 %v1175, %v1176
        %v1178 = vsel %vm1136, %v1126, 0.0
        %v1179 = vadd.f32 %v1177, %v1178
        %v1180 = vsel %vm1136, %v1127, 0.0
        %v1181 = vadd.f32 %v1179, %v1180
        %v1182 = vsel %vm1136, %v1128, 0.0
        %v1183 = vsel %vm1136, %v1129, 0.0
        %v1184 = vadd.f32 %v1182, %v1183
        %v1185 = vsel %vm1136, %v1130, 0.0
        %v1186 = vadd.f32 %v1184, %v1185
        %v1187 = vsel %vm1136, %v1131, 0.0
        %v1188 = vadd.f32 %v1186, %v1187
        %v1189 = vsel %vm1136, %v1132, 0.0
        %v1190 = vadd.f32 %v1188, %v1189
        %v1191 = vsel %vm1136, %v1133, 0.0
        %v1192 = vadd.f32 %v1190, %v1191
        %v1193 = vsel %vm1136, %v1134, 0.0
        %v1194 = vadd.f32 %v1192, %v1193
        %v1195 = vsel %vm1136, %v1135, 0.0
        %v1196 = vadd.f32 %v1194, %v1195
        %v1197 = vsel %vm1136, %v1151, -inf
        %1198 = vmax.xlane.f32.xlu0 %v1197
        %v1199 = vpop.xlane.xlu0 %1198
        %v1200 = vsel %vm1136, %v1166, -inf
        %1201 = vmax.xlane.f32.xlu0 %v1200
        %v1202 = vpop.xlane.xlu0 %1201
        %v1203 = vsel %vm1136, %v1181, -inf
        %1204 = vmax.xlane.f32.xlu0 %v1203
        %v1205 = vpop.xlane.xlu0 %1204
        %v1206 = vsel %vm1136, %v1196, -inf
        %1207 = vmax.xlane.f32.xlu0 %v1206
        %v1208 = vpop.xlane.xlu0 %1207
        %v1209 = vsub.f32 %v1151, %v1199
        %v1210 = vsub.f32 %v1166, %v1202
        %v1211 = vsub.f32 %v1181, %v1205
        %v1212 = vsub.f32 %v1196, %v1208
        %v1213 = vmul.f32 %v1209, 1.442695
        %v1214 = vpow.pop %v1213
        %v1215 = vmul.f32 %v1210, 1.442695
        %v1216 = vpow.pop %v1215
        %v1217 = vmul.f32 %v1211, 1.442695
        %v1218 = vpow.pop %v1217
        %v1219 = vmul.f32 %v1212, 1.442695
        %v1220 = vpow.pop %v1219
        %v1221 = vsel %vm1136, %v1214, 0.0
        %1222 = vadd.xlane.f32.xlu0 %v1221
        %v1223 = vpop.xlane.xlu0 %1222
        %v1224 = vsel %vm1136, %v1216, 0.0
        %1225 = vadd.xlane.f32.xlu0 %v1224
        %v1226 = vpop.xlane.xlu0 %1225
        %v1227 = vsel %vm1136, %v1218, 0.0
        %1228 = vadd.xlane.f32.xlu0 %v1227
        %v1229 = vpop.xlane.xlu0 %1228
        %v1230 = vsel %vm1136, %v1220, 0.0
        %1231 = vadd.xlane.f32.xlu0 %v1230
        %v1232 = vpop.xlane.xlu0 %1231
        %v1234 = vsel %vm1136, %v1214, 0
        %v1237 = vsel %vm1136, %v470, 0
        %1239 = vmatprep.subr.mxu0 0.0
        %1240 = vmatpush1.xpose.msra.mxu0 %v1237
        %1241 = vmatprep.subr.mxu0 0.0
        %1242 = vmatpush1.xpose.msra.mxu0 0.0
        %1243 = vmatprep.subr.mxu0 0.0
        %1244 = vmatpush1.xpose.msra.mxu0 0.0
        %1245 = vmatprep.subr.mxu0 0.0
        %1246 = vmatpush1.xpose.msra.mxu0 0.0
        %1247 = vmatprep.subr.mxu0 0.0
        %1248 = vmatpush1.xpose.msra.mxu0 0.0
        %1249 = vmatprep.subr.mxu0 0.0
        %1250 = vmatpush1.xpose.msra.mxu0 0.0
        %1251 = vmatprep.subr.mxu0 0.0
        %1252 = vmatpush1.xpose.msra.mxu0 0.0
        %1253 = vmatprep.subr.mxu0 0.0
        %1254 = vmatpush1.xpose.msra.mxu0 0.0
        %1255 = vmatprep.subr.mxu0 0.0
        %1256 = vmatpush1.xpose.msra.mxu0 0.0
        %1257 = vmatprep.subr.mxu0 0.0
        %1258 = vmatpush1.xpose.msra.mxu0 0.0
        %1259 = vmatprep.subr.mxu0 0.0
        %1260 = vmatpush1.xpose.msra.mxu0 0.0
        %1261 = vmatprep.subr.mxu0 0.0
        %1262 = vmatpush1.xpose.msra.mxu0 0.0
        %1263 = vmatprep.subr.mxu0 0.0
        %1264 = vmatpush1.xpose.msra.mxu0 0.0
        %1265 = vmatprep.subr.mxu0 0.0
        %1266 = vmatpush1.xpose.msra.mxu0 0.0
        %1267 = vmatprep.subr.mxu0 0.0
        %1268 = vmatpush1.xpose.msra.mxu0 0.0
        %1269 = vmatprep.subr.mxu0 0.0
        %1270 = vmatpush1.xpose.msra.mxu0 0.0
        %1271 = vmatprep.subr.mxu0 0.0
        %1272 = vmatpush1.xpose.msra.mxu0 0.0
        %1273 = vmatprep.subr.mxu0 0.0
        %1274 = vmatpush1.xpose.msra.mxu0 0.0
        %1275 = vmatprep.subr.mxu0 0.0
        %1276 = vmatpush1.xpose.msra.mxu0 0.0
        %1277 = vmatprep.subr.mxu0 0.0
        %1278 = vmatpush1.xpose.msra.mxu0 0.0
        %1279 = vmatprep.subr.mxu0 0.0
        %1280 = vmatpush1.xpose.msra.mxu0 0.0
        %1281 = vmatprep.subr.mxu0 0.0
        %1282 = vmatpush1.xpose.msra.mxu0 0.0
        %1283 = vmatprep.subr.mxu0 0.0
        %1284 = vmatpush1.xpose.msra.mxu0 0.0
        %1285 = vmatprep.subr.mxu0 0.0
        %1286 = vmatpush1.xpose.msra.mxu0 0.0
        %1287 = vmatprep.subr.mxu0 0.0
        %1288 = vmatpush1.xpose.msra.mxu0 0.0
        %1289 = vmatprep.subr.mxu0 0.0
        %1290 = vmatpush1.xpose.msra.mxu0 0.0
        %1291 = vmatprep.subr.mxu0 0.0
        %1292 = vmatpush1.xpose.msra.mxu0 0.0
        %1293 = vmatprep.subr.mxu0 0.0
        %1294 = vmatpush1.xpose.msra.mxu0 0.0
        %1295 = vmatprep.subr.mxu0 0.0
        %1296 = vmatpush1.xpose.msra.mxu0 0.0
        %1297 = vmatprep.subr.mxu0 0.0
        %1298 = vmatpush1.xpose.msra.mxu0 0.0
        %1299 = vmatprep.subr.mxu0 0.0
        %1300 = vmatpush1.xpose.msra.mxu0 0.0
        %1301 = vmatprep.subr.mxu0 0.0
        %1302 = vmatpush1.xpose.msra.mxu0 0.0
        %1303 = vmatprep.mubr.f32.mxu0 0.0
        %1304 = vmatmul.mubr.f32.gmra.mrb[0].mxu0 %v1234
        %v1305 = vpop.f32.mrb[0].mxu0
        %v1306 = vadd.f32 0.0, %v1305
        %v1307 = vpop.f32.mrb[0].mxu0
        %1308 = vdwg.mxu0
        %v1310 = vsel %vm1136, %v1216, 0
        %v1313 = vsel %vm1136, %v475, 0
        %1315 = vmatprep.subr.mxu0 0.0
        %1316 = vmatpush1.xpose.msra.mxu0 %v1313
        %1317 = vmatprep.subr.mxu0 0.0
        %1318 = vmatpush1.xpose.msra.mxu0 0.0
        %1319 = vmatprep.subr.mxu0 0.0
        %1320 = vmatpush1.xpose.msra.mxu0 0.0
        %1321 = vmatprep.subr.mxu0 0.0
        %1322 = vmatpush1.xpose.msra.mxu0 0.0
        %1323 = vmatprep.subr.mxu0 0.0
        %1324 = vmatpush1.xpose.msra.mxu0 0.0
        %1325 = vmatprep.subr.mxu0 0.0
        %1326 = vmatpush1.xpose.msra.mxu0 0.0
        %1327 = vmatprep.subr.mxu0 0.0
        %1328 = vmatpush1.xpose.msra.mxu0 0.0
        %1329 = vmatprep.subr.mxu0 0.0
        %1330 = vmatpush1.xpose.msra.mxu0 0.0
        %1331 = vmatprep.subr.mxu0 0.0
        %1332 = vmatpush1.xpose.msra.mxu0 0.0
        %1333 = vmatprep.subr.mxu0 0.0
        %1334 = vmatpush1.xpose.msra.mxu0 0.0
        %1335 = vmatprep.subr.mxu0 0.0
        %1336 = vmatpush1.xpose.msra.mxu0 0.0
        %1337 = vmatprep.subr.mxu0 0.0
        %1338 = vmatpush1.xpose.msra.mxu0 0.0
        %1339 = vmatprep.subr.mxu0 0.0
        %1340 = vmatpush1.xpose.msra.mxu0 0.0
        %1341 = vmatprep.subr.mxu0 0.0
        %1342 = vmatpush1.xpose.msra.mxu0 0.0
        %1343 = vmatprep.subr.mxu0 0.0
        %1344 = vmatpush1.xpose.msra.mxu0 0.0
        %1345 = vmatprep.subr.mxu0 0.0
        %1346 = vmatpush1.xpose.msra.mxu0 0.0
        %1347 = vmatprep.subr.mxu0 0.0
        %1348 = vmatpush1.xpose.msra.mxu0 0.0
        %1349 = vmatprep.subr.mxu0 0.0
        %1350 = vmatpush1.xpose.msra.mxu0 0.0
        %1351 = vmatprep.subr.mxu0 0.0
        %1352 = vmatpush1.xpose.msra.mxu0 0.0
        %1353 = vmatprep.subr.mxu0 0.0
        %1354 = vmatpush1.xpose.msra.mxu0 0.0
        %1355 = vmatprep.subr.mxu0 0.0
        %1356 = vmatpush1.xpose.msra.mxu0 0.0
        %1357 = vmatprep.subr.mxu0 0.0
        %1358 = vmatpush1.xpose.msra.mxu0 0.0
        %1359 = vmatprep.subr.mxu0 0.0
        %1360 = vmatpush1.xpose.msra.mxu0 0.0
        %1361 = vmatprep.subr.mxu0 0.0
        %1362 = vmatpush1.xpose.msra.mxu0 0.0
        %1363 = vmatprep.subr.mxu0 0.0
        %1364 = vmatpush1.xpose.msra.mxu0 0.0
        %1365 = vmatprep.subr.mxu0 0.0
        %1366 = vmatpush1.xpose.msra.mxu0 0.0
        %1367 = vmatprep.subr.mxu0 0.0
        %1368 = vmatpush1.xpose.msra.mxu0 0.0
        %1369 = vmatprep.subr.mxu0 0.0
        %1370 = vmatpush1.xpose.msra.mxu0 0.0
        %1371 = vmatprep.subr.mxu0 0.0
        %1372 = vmatpush1.xpose.msra.mxu0 0.0
        %1373 = vmatprep.subr.mxu0 0.0
        %1374 = vmatpush1.xpose.msra.mxu0 0.0
        %1375 = vmatprep.subr.mxu0 0.0
        %1376 = vmatpush1.xpose.msra.mxu0 0.0
        %1377 = vmatprep.subr.mxu0 0.0
        %1378 = vmatpush1.xpose.msra.mxu0 0.0
        %1379 = vmatprep.mubr.f32.mxu0 0.0
        %1380 = vmatmul.mubr.f32.gmra.mrb[0].mxu0 %v1310
        %v1381 = vpop.f32.mrb[0].mxu0
        %v1382 = vadd.f32 0.0, %v1381
        %v1383 = vpop.f32.mrb[0].mxu0
        %1384 = vdwg.mxu0
        %v1386 = vsel %vm1136, %v1218, 0
        %v1389 = vsel %vm1136, %v480, 0
        %1391 = vmatprep.subr.mxu0 0.0
        %1392 = vmatpush1.xpose.msra.mxu0 %v1389
        %1393 = vmatprep.subr.mxu0 0.0
        %1394 = vmatpush1.xpose.msra.mxu0 0.0
        %1395 = vmatprep.subr.mxu0 0.0
        %1396 = vmatpush1.xpose.msra.mxu0 0.0
        %1397 = vmatprep.subr.mxu0 0.0
        %1398 = vmatpush1.xpose.msra.mxu0 0.0
        %1399 = vmatprep.subr.mxu0 0.0
        %1400 = vmatpush1.xpose.msra.mxu0 0.0
        %1401 = vmatprep.subr.mxu0 0.0
        %1402 = vmatpush1.xpose.msra.mxu0 0.0
        %1403 = vmatprep.subr.mxu0 0.0
        %1404 = vmatpush1.xpose.msra.mxu0 0.0
        %1405 = vmatprep.subr.mxu0 0.0
        %1406 = vmatpush1.xpose.msra.mxu0 0.0
        %1407 = vmatprep.subr.mxu0 0.0
        %1408 = vmatpush1.xpose.msra.mxu0 0.0
        %1409 = vmatprep.subr.mxu0 0.0
        %1410 = vmatpush1.xpose.msra.mxu0 0.0
        %1411 = vmatprep.subr.mxu0 0.0
        %1412 = vmatpush1.xpose.msra.mxu0 0.0
        %1413 = vmatprep.subr.mxu0 0.0
        %1414 = vmatpush1.xpose.msra.mxu0 0.0
        %1415 = vmatprep.subr.mxu0 0.0
        %1416 = vmatpush1.xpose.msra.mxu0 0.0
        %1417 = vmatprep.subr.mxu0 0.0
        %1418 = vmatpush1.xpose.msra.mxu0 0.0
        %1419 = vmatprep.subr.mxu0 0.0
        %1420 = vmatpush1.xpose.msra.mxu0 0.0
        %1421 = vmatprep.subr.mxu0 0.0
        %1422 = vmatpush1.xpose.msra.mxu0 0.0
        %1423 = vmatprep.subr.mxu0 0.0
        %1424 = vmatpush1.xpose.msra.mxu0 0.0
        %1425 = vmatprep.subr.mxu0 0.0
        %1426 = vmatpush1.xpose.msra.mxu0 0.0
        %1427 = vmatprep.subr.mxu0 0.0
        %1428 = vmatpush1.xpose.msra.mxu0 0.0
        %1429 = vmatprep.subr.mxu0 0.0
        %1430 = vmatpush1.xpose.msra.mxu0 0.0
        %1431 = vmatprep.subr.mxu0 0.0
        %1432 = vmatpush1.xpose.msra.mxu0 0.0
        %1433 = vmatprep.subr.mxu0 0.0
        %1434 = vmatpush1.xpose.msra.mxu0 0.0
        %1435 = vmatprep.subr.mxu0 0.0
        %1436 = vmatpush1.xpose.msra.mxu0 0.0
        %1437 = vmatprep.subr.mxu0 0.0
        %1438 = vmatpush1.xpose.msra.mxu0 0.0
        %1439 = vmatprep.subr.mxu0 0.0
        %1440 = vmatpush1.xpose.msra.mxu0 0.0
        %1441 = vmatprep.subr.mxu0 0.0
        %1442 = vmatpush1.xpose.msra.mxu0 0.0
        %1443 = vmatprep.subr.mxu0 0.0
        %1444 = vmatpush1.xpose.msra.mxu0 0.0
        %1445 = vmatprep.subr.mxu0 0.0
        %1446 = vmatpush1.xpose.msra.mxu0 0.0
        %1447 = vmatprep.subr.mxu0 0.0
        %1448 = vmatpush1.xpose.msra.mxu0 0.0
        %1449 = vmatprep.subr.mxu0 0.0
        %1450 = vmatpush1.xpose.msra.mxu0 0.0
        %1451 = vmatprep.subr.mxu0 0.0
        %1452 = vmatpush1.xpose.msra.mxu0 0.0
        %1453 = vmatprep.subr.mxu0 0.0
        %1454 = vmatpush1.xpose.msra.mxu0 0.0
        %1455 = vmatprep.mubr.f32.mxu0 0.0
        %1456 = vmatmul.mubr.f32.gmra.mrb[0].mxu0 %v1386
        %v1457 = vpop.f32.mrb[0].mxu0
        %v1458 = vadd.f32 0.0, %v1457
        %v1459 = vpop.f32.mrb[0].mxu0
        %1460 = vdwg.mxu0
        %v1462 = vsel %vm1136, %v1220, 0
        %v1465 = vsel %vm1136, %v485, 0
        %1467 = vmatprep.subr.mxu0 0.0
        %1468 = vmatpush1.xpose.msra.mxu0 %v1465
        %1469 = vmatprep.subr.mxu0 0.0
        %1470 = vmatpush1.xpose.msra.mxu0 0.0
        %1471 = vmatprep.subr.mxu0 0.0
        %1472 = vmatpush1.xpose.msra.mxu0 0.0
        %1473 = vmatprep.subr.mxu0 0.0
        %1474 = vmatpush1.xpose.msra.mxu0 0.0
        %1475 = vmatprep.subr.mxu0 0.0
        %1476 = vmatpush1.xpose.msra.mxu0 0.0
        %1477 = vmatprep.subr.mxu0 0.0
        %1478 = vmatpush1.xpose.msra.mxu0 0.0
        %1479 = vmatprep.subr.mxu0 0.0
        %1480 = vmatpush1.xpose.msra.mxu0 0.0
        %1481 = vmatprep.subr.mxu0 0.0
        %1482 = vmatpush1.xpose.msra.mxu0 0.0
        %1483 = vmatprep.subr.mxu0 0.0
        %1484 = vmatpush1.xpose.msra.mxu0 0.0
        %1485 = vmatprep.subr.mxu0 0.0
        %1486 = vmatpush1.xpose.msra.mxu0 0.0
        %1487 = vmatprep.subr.mxu0 0.0
        %1488 = vmatpush1.xpose.msra.mxu0 0.0
        %1489 = vmatprep.subr.mxu0 0.0
        %1490 = vmatpush1.xpose.msra.mxu0 0.0
        %1491 = vmatprep.subr.mxu0 0.0
        %1492 = vmatpush1.xpose.msra.mxu0 0.0
        %1493 = vmatprep.subr.mxu0 0.0
        %1494 = vmatpush1.xpose.msra.mxu0 0.0
        %1495 = vmatprep.subr.mxu0 0.0
        %1496 = vmatpush1.xpose.msra.mxu0 0.0
        %1497 = vmatprep.subr.mxu0 0.0
        %1498 = vmatpush1.xpose.msra.mxu0 0.0
        %1499 = vmatprep.subr.mxu0 0.0
        %1500 = vmatpush1.xpose.msra.mxu0 0.0
        %1501 = vmatprep.subr.mxu0 0.0
        %1502 = vmatpush1.xpose.msra.mxu0 0.0
        %1503 = vmatprep.subr.mxu0 0.0
        %1504 = vmatpush1.xpose.msra.mxu0 0.0
        %1505 = vmatprep.subr.mxu0 0.0
        %1506 = vmatpush1.xpose.msra.mxu0 0.0
        %1507 = vmatprep.subr.mxu0 0.0
        %1508 = vmatpush1.xpose.msra.mxu0 0.0
        %1509 = vmatprep.subr.mxu0 0.0
        %1510 = vmatpush1.xpose.msra.mxu0 0.0
        %1511 = vmatprep.subr.mxu0 0.0
        %1512 = vmatpush1.xpose.msra.mxu0 0.0
        %1513 = vmatprep.subr.mxu0 0.0
        %1514 = vmatpush1.xpose.msra.mxu0 0.0
        %1515 = vmatprep.subr.mxu0 0.0
        %1516 = vmatpush1.xpose.msra.mxu0 0.0
        %1517 = vmatprep.subr.mxu0 0.0
        %1518 = vmatpush1.xpose.msra.mxu0 0.0
        %1519 = vmatprep.subr.mxu0 0.0
        %1520 = vmatpush1.xpose.msra.mxu0 0.0
        %1521 = vmatprep.subr.mxu0 0.0
        %1522 = vmatpush1.xpose.msra.mxu0 0.0
        %1523 = vmatprep.subr.mxu0 0.0
        %1524 = vmatpush1.xpose.msra.mxu0 0.0
        %1525 = vmatprep.subr.mxu0 0.0
        %1526 = vmatpush1.xpose.msra.mxu0 0.0
        %1527 = vmatprep.subr.mxu0 0.0
        %1528 = vmatpush1.xpose.msra.mxu0 0.0
        %1529 = vmatprep.subr.mxu0 0.0
        %1530 = vmatpush1.xpose.msra.mxu0 0.0
        %1531 = vmatprep.mubr.f32.mxu0 0.0
        %1532 = vmatmul.mubr.f32.gmra.mrb[0].mxu0 %v1462
        %v1533 = vpop.f32.mrb[0].mxu0
        %v1534 = vadd.f32 0.0, %v1533
        %v1535 = vpop.f32.mrb[0].mxu0
        %1536 = vdwg.mxu0
        %v1537 = vrcp.pop %v1223
        %v1538 = vrcp.pop %v1226
        %v1539 = vrcp.pop %v1229
        %v1540 = vrcp.pop %v1232
        %v1541 = vmul.f32 %v1306, %v1537
        %v1542 = vmul.f32 %v1382, %v1538
        %v1543 = vmul.f32 %v1458, %v1539
        %v1544 = vmul.f32 %v1534, %v1540
        %1546 = vrot.lane.b32.xlu0 %v1542, 8
        %v1547 = vpop.permute.xlu0 %1546
        %1550 = vrot.lane.b32.xlu0 %v1543, 16
        %v1551 = vpop.permute.xlu0 %1550
        %1554 = vrot.lane.b32.xlu0 %v1544, 24
        %v1555 = vpop.permute.xlu0 %1554
        %v1557 = vsel %vm1136, %v1541, %v1547
        %v1558 = vsel %vm255, %v1557, %v1551
        %vm1559 = vcmask 195584
        %v1560 = vsel %vm1559, %v1558, %v1555
        %vm1561 = vcmask 261120
        %v1563 = vsel %vm1561, %v1560, 0
        %v1566 = vsel %vm1561, %v249, 0
        %v1569 = vsel %vm1561, %v250, 0
        %v1572 = vsel %vm1561, %v251, 0
        %v1575 = vsel %vm1561, %v252, 0
        %1577 = vmatprep.subr.mxu0 0.0
        %1578 = vmatpush1.xpose.msra.mxu0 %v1566
        %1579 = vmatprep.subr.mxu0 0.0
        %1580 = vmatpush1.xpose.msra.mxu0 %v1569
        %1581 = vmatprep.subr.mxu0 0.0
        %1582 = vmatpush1.xpose.msra.mxu0 %v1572
        %1583 = vmatprep.subr.mxu0 0.0
        %1584 = vmatpush1.xpose.msra.mxu0 %v1575
        %1585 = vmatprep.subr.mxu0 0.0
        %1586 = vmatpush1.xpose.msra.mxu0 0.0
        %1587 = vmatprep.subr.mxu0 0.0
        %1588 = vmatpush1.xpose.msra.mxu0 0.0
        %1589 = vmatprep.subr.mxu0 0.0
        %1590 = vmatpush1.xpose.msra.mxu0 0.0
        %1591 = vmatprep.subr.mxu0 0.0
        %1592 = vmatpush1.xpose.msra.mxu0 0.0
        %1593 = vmatprep.subr.mxu0 0.0
        %1594 = vmatpush1.xpose.msra.mxu0 0.0
        %1595 = vmatprep.subr.mxu0 0.0
        %1596 = vmatpush1.xpose.msra.mxu0 0.0
        %1597 = vmatprep.subr.mxu0 0.0
        %1598 = vmatpush1.xpose.msra.mxu0 0.0
        %1599 = vmatprep.subr.mxu0 0.0
        %1600 = vmatpush1.xpose.msra.mxu0 0.0
        %1601 = vmatprep.subr.mxu0 0.0
        %1602 = vmatpush1.xpose.msra.mxu0 0.0
        %1603 = vmatprep.subr.mxu0 0.0
        %1604 = vmatpush1.xpose.msra.mxu0 0.0
        %1605 = vmatprep.subr.mxu0 0.0
        %1606 = vmatpush1.xpose.msra.mxu0 0.0
        %1607 = vmatprep.subr.mxu0 0.0
        %1608 = vmatpush1.xpose.msra.mxu0 0.0
        %1609 = vmatprep.subr.mxu0 0.0
        %1610 = vmatpush1.xpose.msra.mxu0 0.0
        %1611 = vmatprep.subr.mxu0 0.0
        %1612 = vmatpush1.xpose.msra.mxu0 0.0
        %1613 = vmatprep.subr.mxu0 0.0
        %1614 = vmatpush1.xpose.msra.mxu0 0.0
        %1615 = vmatprep.subr.mxu0 0.0
        %1616 = vmatpush1.xpose.msra.mxu0 0.0
        %1617 = vmatprep.subr.mxu0 0.0
        %1618 = vmatpush1.xpose.msra.mxu0 0.0
        %1619 = vmatprep.subr.mxu0 0.0
        %1620 = vmatpush1.xpose.msra.mxu0 0.0
        %1621 = vmatprep.subr.mxu0 0.0
        %1622 = vmatpush1.xpose.msra.mxu0 0.0
        %1623 = vmatprep.subr.mxu0 0.0
        %1624 = vmatpush1.xpose.msra.mxu0 0.0
        %1625 = vmatprep.subr.mxu0 0.0
        %1626 = vmatpush1.xpose.msra.mxu0 0.0
        %1627 = vmatprep.subr.mxu0 0.0
        %1628 = vmatpush1.xpose.msra.mxu0 0.0
        %1629 = vmatprep.subr.mxu0 0.0
        %1630 = vmatpush1.xpose.msra.mxu0 0.0
        %1631 = vmatprep.subr.mxu0 0.0
        %1632 = vmatpush1.xpose.msra.mxu0 0.0
        %1633 = vmatprep.subr.mxu0 0.0
        %1634 = vmatpush1.xpose.msra.mxu0 0.0
        %1635 = vmatprep.subr.mxu0 0.0
        %1636 = vmatpush1.xpose.msra.mxu0 0.0
        %1637 = vmatprep.subr.mxu0 0.0
        %1638 = vmatpush1.xpose.msra.mxu0 0.0
        %1639 = vmatprep.subr.mxu0 0.0
        %1640 = vmatpush1.xpose.msra.mxu0 0.0
        %1641 = vmatprep.mubr.f32.mxu0 0.0
        %1642 = vmatmul.mubr.f32.gmra.mrb[0].mxu0 %v1563
        %v1643 = vpop.f32.mrb[0].mxu0
        %v1644 = vadd.f32 0.0, %v1643
        %v1645 = vpop.f32.mrb[0].mxu0
        %1646 = vdwg.mxu0
        %1647 = vst.msk [vmem:[%s228] sm:$0xff] %vm1561, %v1644
        %s1648 = sand.u32 %s142, 1
        %s1649 = scalar_lea.sflag [#allocation3], %s1648
        %s1650 = sand.u32 %s142, 1
        %s1651 = smul.addr %s1650, 8
        %s1652 = scalar_lea.vmem [#allocation2], %s1651
        // Predicated region
        $region41: #{tpu_custom_call.1} parent=39 // pred_check
          %p1653 = pneg %p152
        $region42: #{tpu_custom_call.1} parent=39 // pred_check_branch
          %1655 = sbr.rel (%p1653) target = $region44
        $region43: #{tpu_custom_call.1} parent=39 // pred_region
          %s1657 = ssub.s32 128, 128
          %1658 = vsyncadd %s1649, %s1657
          %s1659 = smul.addr %s19, 128
          %s1660 = scalar_lea.hbm %s5, %s1659
          %s1662 = sshll.u32 %s1652, 4
          %s1663 = int_to_ptr.vmem [resolvable:$true] %s1662
          %1665 = dma.vmem_to_hbm [thread:$0]  %s1663, 128, %s1660, %s1649
        $region44: #{tpu_custom_call.1} parent=39 // pred_fallthru
          _
      $region40: #{tpu_custom_call.1} parent=5 // pred_fallthru
        _
      %p1666 = scmp.le.s32.totalorder 2, %s14
      // Predicated region
      $region45: #{tpu_custom_call.1} parent=5 // pred_check
        %p1667 = pneg %p1666
      $region46: #{tpu_custom_call.1} parent=5 // pred_check_branch
        %1669 = sbr.rel (%p1667) target = $region48
      $region47: #{tpu_custom_call.1} parent=5 // pred_region
        %s1670 = ssub.s32 %s14, 2
        // Predicated region
        $region49: #{tpu_custom_call.1} parent=47 // pred_check
          %p1671 = pneg %p158
        $region50: #{tpu_custom_call.1} parent=47 // pred_check_branch
          %1673 = sbr.rel (%p1671) target = $region52
        $region51: #{tpu_custom_call.1} parent=47 // pred_region
          %s1674 = sand.u32 %s143, 1
          %s1675 = scalar_lea.sflag [#allocation3], %s1674
          %s1676 = sand.u32 %s143, 1
          %s1677 = smul.addr %s1676, 8
          %s1678 = scalar_lea.vmem [#allocation2], %s1677
          %1679 = dma.done %s1675, 128
        $region52: #{tpu_custom_call.1} parent=47 // pred_fallthru
          _
      $region48: #{tpu_custom_call.1} parent=5 // pred_fallthru
        _
    $region6: #{tpu_custom_call.1} parent=1 // loop_footer
      %s18 = sadd.s32 1, %s14
    $region7: #{tpu_custom_call.1} parent=1 // loop_footer_branch
      %13 = sbr.rel target = $region3
    $region8: #{tpu_custom_call.1} parent=1 // loop_exit
      _
    %1680 = vsyncpa [#allocation3], 1
    %s1681 = scalar_lea.sflag [#allocation3], 1
    %1682 = vsyncpa %s1681, 1

</llo_original>
